<compile_context>
chip_gen: v7x
topology: tpu7x:2x2x1
jax: 0.10.0
libtpu: 0.0.40
codegen_flags: <defaults>
</compile_context>

<pallas_src>
import math
import jax
import jax.numpy as jnp
from jax.experimental import pallas as pl
from jax.experimental.pallas import tpu as pltpu


def dtn_kernel(e1_ref, e2_ref, w_ref, wb1_ref, wb2_ref, bias_ref, out_ref, x_ref):
    # Build the (B, D*D) outer-product matrix once per core (inner index == 0),
    # then reuse it for every streamed weight tile.
    @pl.when(pl.program_id(1) == 0)
    def _():
        e1 = e1_ref[...]                                   # (B, D)
        e2 = e2_ref[...]                                   # (B, D)
        B, D = e1.shape
        x_ref[...] = (e1[:, :, None] * e2[:, None, :]).reshape(B, D * D)

    # Bilinear term: one MXU matmul against the streamed W tile.
    scoring = jnp.dot(x_ref[...], w_ref[...],
                      preferred_element_type=jnp.float32)  # (B, tT)

    # Block term: cat(e1, e2) @ Wb.T  ==  e1 @ wb1 + e2 @ wb2 (no lane concat).
    block = (jnp.dot(e1_ref[...], wb1_ref[...], preferred_element_type=jnp.float32)
             + jnp.dot(e2_ref[...], wb2_ref[...], preferred_element_type=jnp.float32))

    out_ref[...] = (scoring + block
                    + bias_ref[...].astype(jnp.float32)).astype(out_ref.dtype)


def prepare_dtn_params(weight_matrix, weight_matrix_block, bias,
                       param_dtype=jnp.float32):
    """One-time parameter preparation (hoisted out of the per-call hot path).

    weight_matrix:       (D, D, T)  ->  w_flat (D*D, T)   [pure reshape/view]
    weight_matrix_block: (T, 2D)    ->  wb1 (D, T), wb2 (D, T)
    bias:                (T, 1)     ->  bias_row (1, T)

    param_dtype=jnp.bfloat16 halves the dominant HBM weight stream on v6e/v7x
    (f32 accumulation is kept inside the kernel; re-validate tolerance).
    """
    D = weight_matrix.shape[0]
    T = weight_matrix.shape[-1]
    w_flat = weight_matrix.reshape(D * D, T).astype(param_dtype)
    wb1 = weight_matrix_block[:, :D].T.astype(param_dtype)   # (D, T)
    wb2 = weight_matrix_block[:, D:].T.astype(param_dtype)   # (D, T)
    bias_row = bias.reshape(1, T).astype(jnp.float32)
    return w_flat, wb1, wb2, bias_row


def _largest_divisor_leq(n, k):
    k = min(k, n)
    while n % k != 0:
        k -= 1
    return k


def dense_tensor_network(graph_emb1, graph_emb2, w_flat, wb1, wb2, bias_row,
                         *, t_tile=128, n_parallel=2,
                         weight_tile_budget_bytes=12 * 1024 * 1024,
                         vmem_limit_bytes=None):
    """graph_emb1/2: (B, D); params pre-prepared by prepare_dtn_params().
       Returns (B, T)."""
    B, D = graph_emb1.shape
    T = bias_row.shape[-1]
    w_itemsize = jnp.dtype(w_flat.dtype).itemsize

    # Tile size along T: largest divisor of T <= t_tile, further clamped so the
    # double-buffered weight tile fits a conservative VMEM budget.
    tT = _largest_divisor_leq(T, t_tile)
    while tT > 1 and 2 * D * D * tT * w_itemsize > weight_tile_budget_bytes:
        tT = _largest_divisor_leq(T, tT - 1)

    num_tiles = T // tT
    # Outer "parallel" axis (megacore sharding on v7x) x inner "arbitrary" axis
    # (sequential on a core -> safe place to cache the outer product).
    n_outer = n_parallel if (num_tiles % n_parallel == 0
                             and num_tiles >= n_parallel) else 1
    n_inner = num_tiles // n_outer

    def const_map(o, i):
        return (0, 0)

    def t_map(o, i):
        return (0, o * n_inner + i)

    out_itemsize = jnp.dtype(graph_emb1.dtype).itemsize
    cost = pl.CostEstimate(
        flops=2 * B * D * D * T + 2 * B * (2 * D) * T + 3 * B * T,
        transcendentals=0,
        bytes_accessed=(w_flat.size * w_itemsize
                        + wb1.size * jnp.dtype(wb1.dtype).itemsize
                        + wb2.size * jnp.dtype(wb2.dtype).itemsize
                        + bias_row.size * 4
                        + 2 * B * D * out_itemsize
                        + B * T * out_itemsize),
    )

    return pl.pallas_call(
        dtn_kernel,
        out_shape=jax.ShapeDtypeStruct((B, T), graph_emb1.dtype),
        grid_spec=pltpu.PrefetchScalarGridSpec(
            num_scalar_prefetch=0,
            grid=(n_outer, n_inner),
            in_specs=[
                pl.BlockSpec((B, D), const_map),        # e1 (resident)
                pl.BlockSpec((B, D), const_map),        # e2 (resident)
                pl.BlockSpec((D * D, tT), t_map),       # W.reshape(D*D,T) (streamed)
                pl.BlockSpec((D, tT), t_map),           # wb1
                pl.BlockSpec((D, tT), t_map),           # wb2
                pl.BlockSpec((1, tT), t_map),           # bias
            ],
            out_specs=pl.BlockSpec((B, tT), t_map),
            scratch_shapes=[pltpu.VMEM((B, D * D), jnp.float32)],  # cached e1⊗e2
        ),
        compiler_params=pltpu.CompilerParams(
            dimension_semantics=("parallel", "arbitrary"),
            vmem_limit_bytes=vmem_limit_bytes,
        ),
        cost_estimate=cost,
    )(graph_emb1, graph_emb2, w_flat, wb1, wb2, bias_row)


def _xavier_uniform(key, shape):
    """Deterministic xavier_uniform matching torch fan-in/fan-out rules."""
    if len(shape) == 2:
        fan_in, fan_out = shape[1], shape[0]
    else:
        rf = int(math.prod(shape[2:]))
        fan_in, fan_out = shape[1] * rf, shape[0] * rf
    bound = math.sqrt(6.0 / (fan_in + fan_out))
    return jax.random.uniform(key, shape, jnp.float32, -bound, bound)


if __name__ == "__main__":
    # Small but lane-friendly demo shapes (B >= 8 sublanes, T a multiple of 128
    # so output tiles are lane-dense unmasked stores).
    B, D, T = 8, 32, 256

    key = jax.random.PRNGKey(0)
    k1, k2, kw, kb, kbias = jax.random.split(key, 5)

    graph_emb1 = jax.random.normal(k1, (B, D), jnp.float32)
    graph_emb2 = jax.random.normal(k2, (B, D), jnp.float32)

    weight_matrix = _xavier_uniform(kw, (D, D, T))           # (D, D, T)
    weight_matrix_block = _xavier_uniform(kb, (T, 2 * D))    # (T, 2D)
    bias = _xavier_uniform(kbias, (T, 1))                    # (T, 1)

    # One-time parameter prep (NOT per forward call).
    params = prepare_dtn_params(weight_matrix, weight_matrix_block, bias)
    params = jax.tree_util.tree_map(jax.block_until_ready, params)

    out = dense_tensor_network(graph_emb1, graph_emb2, *params, t_tile=128)
    out = jax.block_until_ready(out)

    # Pure-JAX reference matching the PyTorch forward.
    ref_scoring = jnp.einsum('bi,ijt,bj->bt', graph_emb1, weight_matrix, graph_emb2)
    combined = jnp.concatenate([graph_emb1, graph_emb2], axis=1)
    ref_block = combined @ weight_matrix_block.T
    ref = ref_scoring + ref_block + bias.reshape(-1)

    assert out.shape == (B, T)
    assert jnp.allclose(out, ref, atol=1e-4, rtol=1e-4), "mismatch vs reference"

    print("KERNEL_OK")
</pallas_src>

<mosaic_0001>
module attributes {stable_mosaic.version = 11 : i64} {
  func.func @dtn_kernel(%arg0: i32, %arg1: i32, %arg2: memref<8x32xf32, #tpu.memory_space<vmem>>, %arg3: memref<8x32xf32, #tpu.memory_space<vmem>>, %arg4: memref<1024x128xf32, #tpu.memory_space<vmem>>, %arg5: memref<32x128xf32, #tpu.memory_space<vmem>>, %arg6: memref<32x128xf32, #tpu.memory_space<vmem>>, %arg7: memref<1x128xf32, #tpu.memory_space<vmem>>, %arg8: memref<8x128xf32, #tpu.memory_space<vmem>>, %arg9: memref<8x1024xf32, #tpu.memory_space<vmem>>) attributes {dimension_semantics = [#tpu.dimension_semantics<parallel>, #tpu.dimension_semantics<arbitrary>], iteration_bounds = array<i64: 2, 1>, scalar_prefetch = 0 : i64, scratch_operands = 1 : i64, tpu.core_type = #tpu.core_type<tc>, window_params = [{pipeline_mode = #tpu.pipeline_mode<synchronous>, transform_indices = @transform_0, window_bounds = array<i64: 8, 32>}, {pipeline_mode = #tpu.pipeline_mode<synchronous>, transform_indices = @transform_1, window_bounds = array<i64: 8, 32>}, {transform_indices = @transform_2, window_bounds = array<i64: 1024, 128>}, {transform_indices = @transform_3, window_bounds = array<i64: 32, 128>}, {transform_indices = @transform_4, window_bounds = array<i64: 32, 128>}, {transform_indices = @transform_5, window_bounds = array<i64: 1, 128>}, {transform_indices = @transform_6, window_bounds = array<i64: 8, 128>}]} {
    %c0_i32 = arith.constant 0 : i32
    %0 = arith.cmpi eq, %arg1, %c0_i32 : i32
    %1 = arith.extui %0 : i1 to i32
    %c0_i32_0 = arith.constant 0 : i32
    %2 = arith.cmpi ne, %1, %c0_i32_0 : i32
    scf.if %2 {
      %c0_18 = arith.constant 0 : index
      %c0_19 = arith.constant 0 : index
      %18 = vector.load %arg2[%c0_18, %c0_19] : memref<8x32xf32, #tpu.memory_space<vmem>>, vector<8x32xf32>
      %c0_20 = arith.constant 0 : index
      %c0_21 = arith.constant 0 : index
      %19 = vector.load %arg3[%c0_20, %c0_21] : memref<8x32xf32, #tpu.memory_space<vmem>>, vector<8x32xf32>
      %20 = vector.shape_cast %18 : vector<8x32xf32> to vector<8x32x1xf32>
      %21 = vector.shape_cast %19 : vector<8x32xf32> to vector<8x1x32xf32>
      %22 = vector.broadcast %20 : vector<8x32x1xf32> to vector<8x32x32xf32>
      %23 = vector.broadcast %21 : vector<8x1x32xf32> to vector<8x32x32xf32>
      %24 = arith.mulf %22, %23 : vector<8x32x32xf32>
      %25 = vector.shape_cast %24 : vector<8x32x32xf32> to vector<8x1024xf32>
      %c0_22 = arith.constant 0 : index
      %c0_23 = arith.constant 0 : index
      %26 = vector.load %arg9[%c0_22, %c0_23] : memref<8x1024xf32, #tpu.memory_space<vmem>>, vector<8x1024xf32>
      tpu.vector_store %arg9[%c0_22, %c0_23], %25 {strides = array<i32>} : memref<8x1024xf32, #tpu.memory_space<vmem>>, vector<8x1024xf32>,
    } else {
    }
    %c0 = arith.constant 0 : index
    %c0_1 = arith.constant 0 : index
    %3 = vector.load %arg9[%c0, %c0_1] : memref<8x1024xf32, #tpu.memory_space<vmem>>, vector<8x1024xf32>
    %c0_2 = arith.constant 0 : index
    %c0_3 = arith.constant 0 : index
    %4 = vector.load %arg4[%c0_2, %c0_3] : memref<1024x128xf32, #tpu.memory_space<vmem>>, vector<1024x128xf32>
    %cst = arith.constant dense<0.000000e+00> : vector<8x128xf32>
    %5 = tpu.matmul %3, %4, %cst {dimension_numbers = #tpu.dot_dimension_numbers<[1], [0], [0], [1], [0, 0, 1, 1], [], []>} : vector<8x1024xf32>, vector<1024x128xf32>, vector<8x128xf32> -> vector<8x128xf32>
    %c0_4 = arith.constant 0 : index
    %c0_5 = arith.constant 0 : index
    %6 = vector.load %arg2[%c0_4, %c0_5] : memref<8x32xf32, #tpu.memory_space<vmem>>, vector<8x32xf32>
    %c0_6 = arith.constant 0 : index
    %c0_7 = arith.constant 0 : index
    %7 = vector.load %arg5[%c0_6, %c0_7] : memref<32x128xf32, #tpu.memory_space<vmem>>, vector<32x128xf32>
    %cst_8 = arith.constant dense<0.000000e+00> : vector<8x128xf32>
    %8 = tpu.matmul %6, %7, %cst_8 {dimension_numbers = #tpu.dot_dimension_numbers<[1], [0], [0], [1], [0, 0, 1, 1], [], []>} : vector<8x32xf32>, vector<32x128xf32>, vector<8x128xf32> -> vector<8x128xf32>
    %c0_9 = arith.constant 0 : index
    %c0_10 = arith.constant 0 : index
    %9 = vector.load %arg3[%c0_9, %c0_10] : memref<8x32xf32, #tpu.memory_space<vmem>>, vector<8x32xf32>
    %c0_11 = arith.constant 0 : index
    %c0_12 = arith.constant 0 : index
    %10 = vector.load %arg6[%c0_11, %c0_12] : memref<32x128xf32, #tpu.memory_space<vmem>>, vector<32x128xf32>
    %cst_13 = arith.constant dense<0.000000e+00> : vector<8x128xf32>
    %11 = tpu.matmul %9, %10, %cst_13 {dimension_numbers = #tpu.dot_dimension_numbers<[1], [0], [0], [1], [0, 0, 1, 1], [], []>} : vector<8x32xf32>, vector<32x128xf32>, vector<8x128xf32> -> vector<8x128xf32>
    %12 = arith.addf %8, %11 : vector<8x128xf32>
    %13 = arith.addf %5, %12 : vector<8x128xf32>
    %c0_14 = arith.constant 0 : index
    %c0_15 = arith.constant 0 : index
    %14 = vector.load %arg7[%c0_14, %c0_15] : memref<1x128xf32, #tpu.memory_space<vmem>>, vector<1x128xf32>
    %15 = vector.broadcast %14 : vector<1x128xf32> to vector<8x128xf32>
    %16 = arith.addf %13, %15 : vector<8x128xf32>
    %c0_16 = arith.constant 0 : index
    %c0_17 = arith.constant 0 : index
    %17 = vector.load %arg8[%c0_16, %c0_17] : memref<8x128xf32, #tpu.memory_space<vmem>>, vector<8x128xf32>
    tpu.vector_store %arg8[%c0_16, %c0_17], %16 {strides = array<i32>} : memref<8x128xf32, #tpu.memory_space<vmem>>, vector<8x128xf32>,
    return
  }
  func.func @transform_0(%arg0: i32, %arg1: i32) -> (i32, i32) {
    %c0_i32 = arith.constant 0 : i32
    %c0_i32_0 = arith.constant 0 : i32
    %c0_i32_1 = arith.constant 0 : i32
    return %c0_i32, %c0_i32_0 : i32, i32
  }
  func.func @transform_1(%arg0: i32, %arg1: i32) -> (i32, i32) {
    %c0_i32 = arith.constant 0 : i32
    %c0_i32_0 = arith.constant 0 : i32
    %c0_i32_1 = arith.constant 0 : i32
    return %c0_i32, %c0_i32_0 : i32, i32
  }
  func.func @transform_2(%arg0: i32, %arg1: i32) -> (i32, i32) {
    %c1_i32 = arith.constant 1 : i32
    %0 = arith.muli %arg0, %c1_i32 : i32
    %1 = arith.addi %0, %arg1 : i32
    %c0_i32 = arith.constant 0 : i32
    %c0_i32_0 = arith.constant 0 : i32
    return %c0_i32, %1 : i32, i32
  }
  func.func @transform_3(%arg0: i32, %arg1: i32) -> (i32, i32) {
    %c1_i32 = arith.constant 1 : i32
    %0 = arith.muli %arg0, %c1_i32 : i32
    %1 = arith.addi %0, %arg1 : i32
    %c0_i32 = arith.constant 0 : i32
    %c0_i32_0 = arith.constant 0 : i32
    return %c0_i32, %1 : i32, i32
  }
  func.func @transform_4(%arg0: i32, %arg1: i32) -> (i32, i32) {
    %c1_i32 = arith.constant 1 : i32
    %0 = arith.muli %arg0, %c1_i32 : i32
    %1 = arith.addi %0, %arg1 : i32
    %c0_i32 = arith.constant 0 : i32
    %c0_i32_0 = arith.constant 0 : i32
    return %c0_i32, %1 : i32, i32
  }
  func.func @transform_5(%arg0: i32, %arg1: i32) -> (i32, i32) {
    %c1_i32 = arith.constant 1 : i32
    %0 = arith.muli %arg0, %c1_i32 : i32
    %1 = arith.addi %0, %arg1 : i32
    %c0_i32 = arith.constant 0 : i32
    %c0_i32_0 = arith.constant 0 : i32
    return %c0_i32, %1 : i32, i32
  }
  func.func @transform_6(%arg0: i32, %arg1: i32) -> (i32, i32) {
    %c1_i32 = arith.constant 1 : i32
    %0 = arith.muli %arg0, %c1_i32 : i32
    %1 = arith.addi %0, %arg1 : i32
    %c0_i32 = arith.constant 0 : i32
    %c0_i32_0 = arith.constant 0 : i32
    return %c0_i32, %1 : i32, i32
  }
}

</mosaic_0001>

<llo_original>
// kernel: tpu_custom_call.1
$region0: #{tpu_custom_call.1}
  #allocation0 [shape = 'u32[]', space=smem, size = 0x4, offset = 0x4, fixed_abs, tag = 'smem constant byte address 0x4 - core index']
  #allocation1 [shape = 'u32[144,128]{1,0:T(1,128)}', space=vmem, size = 0x12000, scoped, tag = 'internal scratch']
  #allocation2 [shape = 'f32[8,1024]{1,0:T(8,128)}', space=vmem, size = 0x8000, scoped, tag = 'scratch operand']
  %s0 = inlined_call_operand.hbm [shape: f32[8,32], index: 0, kind: input, shape index: {}]
  %s1 = inlined_call_operand.hbm [shape: f32[8,32], index: 1, kind: input, shape index: {}]
  %s2 = inlined_call_operand.hbm [shape: f32[1024,256], index: 2, kind: input, shape index: {}]
  %s3 = inlined_call_operand.hbm [shape: f32[32,256], index: 3, kind: input, shape index: {}]
  %s4 = inlined_call_operand.hbm [shape: f32[32,256], index: 4, kind: input, shape index: {}]
  %s5 = inlined_call_operand.vmem [shape: f32[1,256], index: 5, kind: input, shape index: {}]
  %s6 = inlined_call_operand.hbm [shape: f32[8,256], index: 6, kind: output, shape index: {}]
  %s7 = sld [smem:[#allocation0]]
  $region81: #{tpu_custom_call.1} parent=0
    _
  %s9 = ssub.s32 1, %s7
  %s10 = scalar_select 0, %s9, %s7
  $region1: #{tpu_custom_call.1} parent=0
    #allocation3 [shape = 'u8[4096]{0}', space=vmem, size = 0x1000, scoped, tag = 'input window, operand 0, single buffered']
    #allocation4 [shape = 's32[2]{0}', space=sflag, size = 0x8, scoped, tag = 'scoped memory for tpu_custom_call.1']
    #allocation5 [shape = 's32[2]{0}', space=sflag, size = 0x8, scoped, tag = 'scoped memory for tpu_custom_call.1']
    #allocation6 [shape = 'u8[4096]{0}', space=vmem, size = 0x1000, scoped, tag = 'input window, operand 1, single buffered']
    #allocation7 [shape = 's32[1]{0}', space=sflag, size = 0x4, scoped, tag = 'scoped memory for tpu_custom_call.1']
    #allocation8 [shape = 'u8[1048576]{0}', space=vmem, size = 0x100000, scoped, tag = 'input window, operand 2']
    #allocation9 [shape = 'u8[32768]{0}', space=vmem, size = 0x8000, scoped, tag = 'input window, operand 3']
    #allocation10 [shape = 'u8[32768]{0}', space=vmem, size = 0x8000, scoped, tag = 'input window, operand 4']
    #allocation11 [shape = 'u8[8192]{0}', space=vmem, size = 0x2000, scoped, tag = 'output window, operand 0']
    %11 = vsyncpa [#allocation4], 0
    %12 = vsyncpa [#allocation7], 0
    %13 = vsyncpa [#allocation5], 0
    %s14 = scalar_lea.sflag [#allocation5], 1
    %15 = vsyncpa %s14, 0
    loop: start=0, step=1, limit=4
    $region2: #{tpu_custom_call.1} parent=1 // loop_pre_header
      _
    $region3: #{tpu_custom_call.1} parent=1 // loop_header
      %s17 = sphi 0, %s21
      %p18 = scmp.ge.s32.totalorder %s17, 4
      %s24 = sphi 0, %s36
      %s25 = sphi 0, %s32
      %s26 = sphi 0, %s24
      %s27 = sphi 0, %s25
      %s28 = sphi 0, %s26
      %s29 = sphi 0, %s27
      %s37 = sphi 0, %s37
      %s39 = sphi 0, %s37
      %s40 = sphi 0, %s39
      %s54 = sphi 0, %s40
      %s58 = sphi 0, %s58
      %s60 = sphi 0, %s58
      %s61 = sphi 0, %s60
      %s75 = sphi 0, %s61
      %s83 = sphi 0, %s85
      %s86 = sphi 0, %s83
      %s87 = sphi 0, %s86
      %s103 = sphi 0, %s87
      %s111 = sphi 0, %s113
      %s114 = sphi 0, %s111
      %s115 = sphi 0, %s114
      %s131 = sphi 0, %s115
      %s139 = sphi 0, %s141
      %s142 = sphi 0, %s139
      %s143 = sphi 0, %s142
      %s159 = sphi 0, %s143
      %s167 = sphi 0, %s169
      %s170 = sphi 0, %s167
      %s171 = sphi 0, %s170
      %s187 = sphi 0, %s171
      %s195 = sphi 0, %s197
      %s198 = sphi 0, %s195
      %s199 = sphi 0, %s198
      %s215 = sphi 0, %s199
    $region4: #{tpu_custom_call.1} parent=1 // loop_header_branch
      %20 = sbr.rel (%p18) target = $region8
    $region5: #{tpu_custom_call.1} parent=1 // loop_body
      %s22 = ssub.s32 %s17, 1
      %s23 = ssub.s32 %s17, 2
      %s30 = sadd.s32 1, %s25
      %p31 = scmp.ge.s32.totalorder %s30, 1
      %s32 = scalar_select %p31, 0, %s30
      %s33 = sadd.s32 1, %s24
      %s34 = scalar_select %p31, %s33, %s24
      %p35 = scmp.ge.s32.totalorder %s34, 2
      %s36 = scalar_select %p35, 0, %s34
      %s38 = sadd.s32 %s37, 1
      %p41 = scmp.eq.s32.totalorder %s17, 1
      %p42 = scmp.ne.s32.totalorder %s37, %s39
      %p43 = scmp.eq.s32.totalorder %s17, 0
      %p44 = por %p42, %p43
      %p45 = scmp.ne.s32.totalorder %s37, %s39
      %p46 = scmp.eq.s32.totalorder %s22, 1
      %p47 = por %p45, %p46
      %p48 = scmp.ne.s32.totalorder %s39, %s40
      %p49 = scmp.eq.s32.totalorder %s22, 0
      %p50 = por %p48, %p49
      %p51 = scmp.ne.s32.totalorder %s39, %s40
      %p52 = scmp.eq.s32.totalorder %s23, 1
      %p53 = por %p51, %p52
      %p55 = scmp.ne.s32.totalorder %s40, %s54
      %p56 = scmp.eq.s32.totalorder %s23, 0
      %p57 = por %p55, %p56
      %s59 = sadd.s32 %s58, 1
      %p62 = scmp.eq.s32.totalorder %s17, 1
      %p63 = scmp.ne.s32.totalorder %s58, %s60
      %p64 = scmp.eq.s32.totalorder %s17, 0
      %p65 = por %p63, %p64
      %p66 = scmp.ne.s32.totalorder %s58, %s60
      %p67 = scmp.eq.s32.totalorder %s22, 1
      %p68 = por %p66, %p67
      %p69 = scmp.ne.s32.totalorder %s60, %s61
      %p70 = scmp.eq.s32.totalorder %s22, 0
      %p71 = por %p69, %p70
      %p72 = scmp.ne.s32.totalorder %s60, %s61
      %p73 = scmp.eq.s32.totalorder %s23, 1
      %p74 = por %p72, %p73
      %p76 = scmp.ne.s32.totalorder %s61, %s75
      %p77 = scmp.eq.s32.totalorder %s23, 0
      %p78 = por %p76, %p77
      %s79 = sadd.s32 %s24, %s25
      %s80 = sadd.s32 %s36, %s32
      %s81 = ssub.s32 %s79, %s80
      %p82 = scmp.eq.s32.totalorder %s81, 0
      %s84 = sadd.s32 %s83, 1
      %s85 = scalar_select %p82, %s83, %s84
      %p88 = pneg %p82
      %p89 = scmp.eq.s32.totalorder %s17, 1
      %p90 = por %p88, %p89
      %p91 = scmp.ne.s32.totalorder %s83, %s86
      %p92 = scmp.eq.s32.totalorder %s17, 0
      %p93 = por %p91, %p92
      %p94 = scmp.ne.s32.totalorder %s83, %s86
      %p95 = scmp.eq.s32.totalorder %s22, 1
      %p96 = por %p94, %p95
      %p97 = scmp.ne.s32.totalorder %s86, %s87
      %p98 = scmp.eq.s32.totalorder %s22, 0
      %p99 = por %p97, %p98
      %p100 = scmp.ne.s32.totalorder %s86, %s87
      %p101 = scmp.eq.s32.totalorder %s23, 1
      %p102 = por %p100, %p101
      %p104 = scmp.ne.s32.totalorder %s87, %s103
      %p105 = scmp.eq.s32.totalorder %s23, 0
      %p106 = por %p104, %p105
      %s107 = sadd.s32 %s24, %s25
      %s108 = sadd.s32 %s36, %s32
      %s109 = ssub.s32 %s107, %s108
      %p110 = scmp.eq.s32.totalorder %s109, 0
      %s112 = sadd.s32 %s111, 1
      %s113 = scalar_select %p110, %s111, %s112
      %p116 = pneg %p110
      %p117 = scmp.eq.s32.totalorder %s17, 1
      %p118 = por %p116, %p117
      %p119 = scmp.ne.s32.totalorder %s111, %s114
      %p120 = scmp.eq.s32.totalorder %s17, 0
      %p121 = por %p119, %p120
      %p122 = scmp.ne.s32.totalorder %s111, %s114
      %p123 = scmp.eq.s32.totalorder %s22, 1
      %p124 = por %p122, %p123
      %p125 = scmp.ne.s32.totalorder %s114, %s115
      %p126 = scmp.eq.s32.totalorder %s22, 0
      %p127 = por %p125, %p126
      %p128 = scmp.ne.s32.totalorder %s114, %s115
      %p129 = scmp.eq.s32.totalorder %s23, 1
      %p130 = por %p128, %p129
      %p132 = scmp.ne.s32.totalorder %s115, %s131
      %p133 = scmp.eq.s32.totalorder %s23, 0
      %p134 = por %p132, %p133
      %s135 = sadd.s32 %s24, %s25
      %s136 = sadd.s32 %s36, %s32
      %s137 = ssub.s32 %s135, %s136
      %p138 = scmp.eq.s32.totalorder %s137, 0
      %s140 = sadd.s32 %s139, 1
      %s141 = scalar_select %p138, %s139, %s140
      %p144 = pneg %p138
      %p145 = scmp.eq.s32.totalorder %s17, 1
      %p146 = por %p144, %p145
      %p147 = scmp.ne.s32.totalorder %s139, %s142
      %p148 = scmp.eq.s32.totalorder %s17, 0
      %p149 = por %p147, %p148
      %p150 = scmp.ne.s32.totalorder %s139, %s142
      %p151 = scmp.eq.s32.totalorder %s22, 1
      %p152 = por %p150, %p151
      %p153 = scmp.ne.s32.totalorder %s142, %s143
      %p154 = scmp.eq.s32.totalorder %s22, 0
      %p155 = por %p153, %p154
      %p156 = scmp.ne.s32.totalorder %s142, %s143
      %p157 = scmp.eq.s32.totalorder %s23, 1
      %p158 = por %p156, %p157
      %p160 = scmp.ne.s32.totalorder %s143, %s159
      %p161 = scmp.eq.s32.totalorder %s23, 0
      %p162 = por %p160, %p161
      %s163 = sadd.s32 %s24, %s25
      %s164 = sadd.s32 %s36, %s32
      %s165 = ssub.s32 %s163, %s164
      %p166 = scmp.eq.s32.totalorder %s165, 0
      %s168 = sadd.s32 %s167, 1
      %s169 = scalar_select %p166, %s167, %s168
      %p172 = pneg %p166
      %p173 = scmp.eq.s32.totalorder %s17, 1
      %p174 = por %p172, %p173
      %p175 = scmp.ne.s32.totalorder %s167, %s170
      %p176 = scmp.eq.s32.totalorder %s17, 0
      %p177 = por %p175, %p176
      %p178 = scmp.ne.s32.totalorder %s167, %s170
      %p179 = scmp.eq.s32.totalorder %s22, 1
      %p180 = por %p178, %p179
      %p181 = scmp.ne.s32.totalorder %s170, %s171
      %p182 = scmp.eq.s32.totalorder %s22, 0
      %p183 = por %p181, %p182
      %p184 = scmp.ne.s32.totalorder %s170, %s171
      %p185 = scmp.eq.s32.totalorder %s23, 1
      %p186 = por %p184, %p185
      %p188 = scmp.ne.s32.totalorder %s171, %s187
      %p189 = scmp.eq.s32.totalorder %s23, 0
      %p190 = por %p188, %p189
      %s191 = sadd.s32 %s24, %s25
      %s192 = sadd.s32 %s36, %s32
      %s193 = ssub.s32 %s191, %s192
      %p194 = scmp.eq.s32.totalorder %s193, 0
      %s196 = sadd.s32 %s195, 1
      %s197 = scalar_select %p194, %s195, %s196
      %p200 = pneg %p194
      %p201 = scmp.eq.s32.totalorder %s17, 1
      %p202 = por %p200, %p201
      %p203 = scmp.ne.s32.totalorder %s195, %s198
      %p204 = scmp.eq.s32.totalorder %s17, 0
      %p205 = por %p203, %p204
      %p206 = scmp.ne.s32.totalorder %s195, %s198
      %p207 = scmp.eq.s32.totalorder %s22, 1
      %p208 = por %p206, %p207
      %p209 = scmp.ne.s32.totalorder %s198, %s199
      %p210 = scmp.eq.s32.totalorder %s22, 0
      %p211 = por %p209, %p210
      %p212 = scmp.ne.s32.totalorder %s198, %s199
      %p213 = scmp.eq.s32.totalorder %s23, 1
      %p214 = por %p212, %p213
      %p216 = scmp.ne.s32.totalorder %s199, %s215
      %p217 = scmp.eq.s32.totalorder %s23, 0
      %p218 = por %p216, %p217
      %p219 = scmp.le.s32.totalorder 1, %s17
      %p220 = scmp.lt.s32.totalorder %s17, 3
      %p221 = pnand %p219, %p220
      %p222 = pneg %p221
      // Predicated region
      $region9: #{tpu_custom_call.1} parent=5 // pred_check
        _
      $region10: #{tpu_custom_call.1} parent=5 // pred_check_branch
        %224 = sbr.rel (%p221) target = $region12
      $region11: #{tpu_custom_call.1} parent=5 // pred_region
        %s225 = ssub.s32 %s17, 1
        // Predicated region
        $region13: #{tpu_custom_call.1} parent=11 // pred_check
          %p226 = pneg %p50
        $region14: #{tpu_custom_call.1} parent=11 // pred_check_branch
          %228 = sbr.rel (%p226) target = $region16
        $region15: #{tpu_custom_call.1} parent=11 // pred_region
          %s230 = ssub.s32 128, 128
          %231 = vsyncadd [#allocation4], %s230
          %s233 = sshll.u32 [#allocation3], 4
          %s234 = int_to_ptr.vmem [resolvable:$true] %s233
          %236 = dma.hbm_to_vmem [thread:$0]  %s0, 128, %s234, [#allocation4]
        $region16: #{tpu_custom_call.1} parent=11 // pred_fallthru
          _
        // Predicated region
        $region17: #{tpu_custom_call.1} parent=11 // pred_check
          %p237 = pneg %p71
        $region18: #{tpu_custom_call.1} parent=11 // pred_check_branch
          %239 = sbr.rel (%p237) target = $region20
        $region19: #{tpu_custom_call.1} parent=11 // pred_region
          %s241 = ssub.s32 128, 128
          %242 = vsyncadd [#allocation7], %s241
          %s244 = sshll.u32 [#allocation6], 4
          %s245 = int_to_ptr.vmem [resolvable:$true] %s244
          %247 = dma.hbm_to_vmem [thread:$0]  %s1, 128, %s245, [#allocation7]
        $region20: #{tpu_custom_call.1} parent=11 // pred_fallthru
          _
      $region12: #{tpu_custom_call.1} parent=5 // pred_fallthru
        _
      %p248 = scmp.lt.s32.totalorder %s17, 2
      // Predicated region
      $region21: #{tpu_custom_call.1} parent=5 // pred_check
        %p249 = pneg %p248
      $region22: #{tpu_custom_call.1} parent=5 // pred_check_branch
        %251 = sbr.rel (%p249) target = $region24
      $region23: #{tpu_custom_call.1} parent=5 // pred_region
        // Predicated region
        $region25: #{tpu_custom_call.1} parent=23 // pred_check
          %p252 = pneg %p93
        $region26: #{tpu_custom_call.1} parent=23 // pred_check_branch
          %254 = sbr.rel (%p252) target = $region28
        $region27: #{tpu_custom_call.1} parent=23 // pred_region
          %s255 = sand.u32 %s17, 1
          %s256 = scalar_lea.sflag [#allocation4], %s255
          %s257 = sand.u32 %s83, 1
          %s258 = smul.addr %s257, 1024
          %s259 = scalar_lea.vmem [#allocation8], %s258
          %s260 = sadd.s32 %s24, %s25
          %s262 = ssub.s32 16384, 16384
          %263 = vsyncadd %s256, %s262
          %s264 = smul.addr %s260, 128
          %s265 = scalar_lea.hbm %s2, %s264
          %s266 = sshll.u32 %s259, 4
          %s267 = int_to_ptr.vmem [resolvable:$true] %s266
          %272 = dma.hbm_to_vmem [thread:$0]  %s265, 16384, %s267, %s256, 256, 128, 8
        $region28: #{tpu_custom_call.1} parent=23 // pred_fallthru
          _
        // Predicated region
        $region29: #{tpu_custom_call.1} parent=23 // pred_check
          %p273 = pneg %p121
        $region30: #{tpu_custom_call.1} parent=23 // pred_check_branch
          %275 = sbr.rel (%p273) target = $region32
        $region31: #{tpu_custom_call.1} parent=23 // pred_region
          %s276 = sand.u32 %s17, 1
          %s277 = scalar_lea.sflag [#allocation4], %s276
          %s278 = sand.u32 %s111, 1
          %s279 = smul.addr %s278, 32
          %s280 = scalar_lea.vmem [#allocation9], %s279
          %s281 = sadd.s32 %s24, %s25
          %s283 = ssub.s32 512, 512
          %284 = vsyncadd %s277, %s283
          %s285 = smul.addr %s281, 128
          %s286 = scalar_lea.hbm %s3, %s285
          %s287 = sshll.u32 %s280, 4
          %s288 = int_to_ptr.vmem [resolvable:$true] %s287
          %293 = dma.hbm_to_vmem [thread:$0]  %s286, 512, %s288, %s277, 256, 128, 8
        $region32: #{tpu_custom_call.1} parent=23 // pred_fallthru
          _
        // Predicated region
        $region33: #{tpu_custom_call.1} parent=23 // pred_check
          %p294 = pneg %p149
        $region34: #{tpu_custom_call.1} parent=23 // pred_check_branch
          %296 = sbr.rel (%p294) target = $region36
        $region35: #{tpu_custom_call.1} parent=23 // pred_region
          %s297 = sand.u32 %s17, 1
          %s298 = scalar_lea.sflag [#allocation4], %s297
          %s299 = sand.u32 %s139, 1
          %s300 = smul.addr %s299, 32
          %s301 = scalar_lea.vmem [#allocation10], %s300
          %s302 = sadd.s32 %s24, %s25
          %s304 = ssub.s32 512, 512
          %305 = vsyncadd %s298, %s304
          %s306 = smul.addr %s302, 128
          %s307 = scalar_lea.hbm %s4, %s306
          %s308 = sshll.u32 %s301, 4
          %s309 = int_to_ptr.vmem [resolvable:$true] %s308
          %314 = dma.hbm_to_vmem [thread:$0]  %s307, 512, %s309, %s298, 256, 128, 8
        $region36: #{tpu_custom_call.1} parent=23 // pred_fallthru
          _
        // Predicated region
        $region37: #{tpu_custom_call.1} parent=23 // pred_check
          %p315 = pneg %p177
        $region38: #{tpu_custom_call.1} parent=23 // pred_check_branch
          %317 = sbr.rel (%p315) target = $region40
        $region39: #{tpu_custom_call.1} parent=23 // pred_region
          %s318 = sadd.s32 %s24, %s25
          %p319 = scmp.lt.s32.totalorder %s318, 1
          %s320 = scalar_select %p319, %s318, 1
          %s321 = scalar_lea.vmem %s5, %s320
          %s322 = sadd.s32 %s24, %s25
        $region40: #{tpu_custom_call.1} parent=23 // pred_fallthru
          _
      $region24: #{tpu_custom_call.1} parent=5 // pred_fallthru
        _
      %p323 = scmp.le.s32.totalorder 1, %s17
      %p324 = scmp.lt.s32.totalorder %s17, 3
      %p325 = pnand %p323, %p324
      %p326 = pneg %p325
      // Predicated region
      $region41: #{tpu_custom_call.1} parent=5 // pred_check
        _
      $region42: #{tpu_custom_call.1} parent=5 // pred_check_branch
        %328 = sbr.rel (%p325) target = $region44
      $region43: #{tpu_custom_call.1} parent=5 // pred_region
        %s329 = ssub.s32 %s17, 1
        // Predicated region
        $region45: #{tpu_custom_call.1} parent=43 // pred_check
          %p330 = pneg %p50
        $region46: #{tpu_custom_call.1} parent=43 // pred_check_branch
          %332 = sbr.rel (%p330) target = $region48
        $region47: #{tpu_custom_call.1} parent=43 // pred_region
          %333 = dma.done [#allocation4], 128
        $region48: #{tpu_custom_call.1} parent=43 // pred_fallthru
          _
        // Predicated region
        $region49: #{tpu_custom_call.1} parent=43 // pred_check
          %p334 = pneg %p71
        $region50: #{tpu_custom_call.1} parent=43 // pred_check_branch
          %336 = sbr.rel (%p334) target = $region52
        $region51: #{tpu_custom_call.1} parent=43 // pred_region
          %337 = dma.done [#allocation7], 128
        $region52: #{tpu_custom_call.1} parent=43 // pred_fallthru
          _
        %s338 = sand.u32 %s22, 1
        %s339 = scalar_lea.sflag [#allocation4], %s338
        %s340 = sand.u32 %s86, 1
        %s341 = smul.addr %s340, 1024
        %s342 = scalar_lea.vmem [#allocation8], %s341
        // Predicated region
        $region53: #{tpu_custom_call.1} parent=43 // pred_check
          %p343 = pneg %p99
        $region54: #{tpu_custom_call.1} parent=43 // pred_check_branch
          %345 = sbr.rel (%p343) target = $region56
        $region55: #{tpu_custom_call.1} parent=43 // pred_region
          %346 = dma.done %s339, 16384
        $region56: #{tpu_custom_call.1} parent=43 // pred_fallthru
          _
        %s347 = sand.u32 %s22, 1
        %s348 = scalar_lea.sflag [#allocation4], %s347
        %s349 = sand.u32 %s114, 1
        %s350 = smul.addr %s349, 32
        %s351 = scalar_lea.vmem [#allocation9], %s350
        // Predicated region
        $region57: #{tpu_custom_call.1} parent=43 // pred_check
          %p352 = pneg %p127
        $region58: #{tpu_custom_call.1} parent=43 // pred_check_branch
          %354 = sbr.rel (%p352) target = $region60
        $region59: #{tpu_custom_call.1} parent=43 // pred_region
          %355 = dma.done %s348, 512
        $region60: #{tpu_custom_call.1} parent=43 // pred_fallthru
          _
        %s356 = sand.u32 %s22, 1
        %s357 = scalar_lea.sflag [#allocation4], %s356
        %s358 = sand.u32 %s142, 1
        %s359 = smul.addr %s358, 32
        %s360 = scalar_lea.vmem [#allocation10], %s359
        // Predicated region
        $region61: #{tpu_custom_call.1} parent=43 // pred_check
          %p361 = pneg %p155
        $region62: #{tpu_custom_call.1} parent=43 // pred_check_branch
          %363 = sbr.rel (%p361) target = $region64
        $region63: #{tpu_custom_call.1} parent=43 // pred_region
          %364 = dma.done %s357, 512
        $region64: #{tpu_custom_call.1} parent=43 // pred_fallthru
          _
        %p365 = pneg %p50
        %p366 = pneg %p47
        %p367 = pneg %p71
        %p368 = pneg %p68
        %s369 = sand.u32 %s22, 1
        %s370 = scalar_lea.sflag [#allocation4], %s369
        %s371 = sand.u32 %s86, 1
        %s372 = smul.addr %s371, 1024
        %s373 = scalar_lea.vmem [#allocation8], %s372
        %p374 = pneg %p99
        %p375 = pneg %p96
        %s376 = sand.u32 %s22, 1
        %s377 = scalar_lea.sflag [#allocation4], %s376
        %s378 = sand.u32 %s114, 1
        %s379 = smul.addr %s378, 32
        %s380 = scalar_lea.vmem [#allocation9], %s379
        %p381 = pneg %p127
        %p382 = pneg %p124
        %s383 = sand.u32 %s22, 1
        %s384 = scalar_lea.sflag [#allocation4], %s383
        %s385 = sand.u32 %s142, 1
        %s386 = smul.addr %s385, 32
        %s387 = scalar_lea.vmem [#allocation10], %s386
        %p388 = pneg %p155
        %p389 = pneg %p152
        %s390 = sadd.s32 %s26, %s27
        %p391 = scmp.lt.s32.totalorder %s390, 1
        %s392 = scalar_select %p391, %s390, 1
        %s393 = scalar_lea.vmem %s5, %s392
        %p394 = pneg %p183
        %p395 = pneg %p180
        %p396 = pneg %p211
        %p397 = pneg %p208
        %s398 = sand.u32 %s198, 1
        %s399 = scalar_lea.sflag [#allocation5], %s398
        %s400 = sand.u32 %s198, 1
        %s401 = smul.addr %s400, 8
        %s402 = scalar_lea.vmem [#allocation11], %s401
        %s403 = sadd.s32 %s26, %s27
        %s404 = sadd.s32 %s26, %s27
        %s405 = sadd.s32 %s26, %s27
        %s406 = sadd.s32 %s26, %s27
        %p407 = scmp.lt.s32.totalorder %s406, 1
        %s408 = scalar_select %p407, %s406, 1
        %s409 = scalar_lea.vmem %s5, %s408
        %s410 = sadd.s32 %s26, %s27
        %s411 = sadd.s32 %s26, %s27
        %p412 = scmp.eq.s32.totalorder %s27, 0
        // Predicated region
        $region65: #{tpu_custom_call.1} parent=43 // pred_check
          %p413 = pneg %p412
        $region66: #{tpu_custom_call.1} parent=43 // pred_check_branch
          %415 = sbr.rel (%p413) target = $region68
        $region67: #{tpu_custom_call.1} parent=43 // pred_region
          %v416 = vld [vmem:[#allocation3] sm:$0xff]
          %v417 = vld [vmem:[#allocation6] sm:$0xff]
          %v418 = vlaneseq
          %v419 = vshrl.u32 %v418, 7
          %v420 = vsub.s32 0, %v419
          %v421 = vrot.slane %v416, %v420
          %423 = vbcast.lane.b32.xlu0 %v421, 256
          %v424 = vpop.permute.xlu0 %423
          %s426 = sor.u32 256, 8
          %427 = vbcast.lane.b32.xlu0 %v421, %s426
          %v428 = vpop.permute.xlu0 %427
          %s430 = sor.u32 256, 16
          %431 = vbcast.lane.b32.xlu0 %v421, %s430
          %v432 = vpop.permute.xlu0 %431
          %s434 = sor.u32 256, 24
          %435 = vbcast.lane.b32.xlu0 %v421, %s434
          %v436 = vpop.permute.xlu0 %435
          %v437 = vlaneseq
          %v438 = vshrl.u32 %v437, 7
          %v439 = vsub.s32 1, %v438
          %v440 = vrot.slane %v416, %v439
          %442 = vbcast.lane.b32.xlu0 %v440, 256
          %v443 = vpop.permute.xlu0 %442
          %s445 = sor.u32 256, 8
          %446 = vbcast.lane.b32.xlu0 %v440, %s445
          %v447 = vpop.permute.xlu0 %446
          %s449 = sor.u32 256, 16
          %450 = vbcast.lane.b32.xlu0 %v440, %s449
          %v451 = vpop.permute.xlu0 %450
          %s453 = sor.u32 256, 24
          %454 = vbcast.lane.b32.xlu0 %v440, %s453
          %v455 = vpop.permute.xlu0 %454
          %v456 = vlaneseq
          %v457 = vshrl.u32 %v456, 7
          %v458 = vsub.s32 2, %v457
          %v459 = vrot.slane %v416, %v458
          %461 = vbcast.lane.b32.xlu0 %v459, 256
          %v462 = vpop.permute.xlu0 %461
          %s464 = sor.u32 256, 8
          %465 = vbcast.lane.b32.xlu0 %v459, %s464
          %v466 = vpop.permute.xlu0 %465
          %s468 = sor.u32 256, 16
          %469 = vbcast.lane.b32.xlu0 %v459, %s468
          %v470 = vpop.permute.xlu0 %469
          %s472 = sor.u32 256, 24
          %473 = vbcast.lane.b32.xlu0 %v459, %s472
          %v474 = vpop.permute.xlu0 %473
          %v475 = vlaneseq
          %v476 = vshrl.u32 %v475, 7
          %v477 = vsub.s32 3, %v476
          %v478 = vrot.slane %v416, %v477
          %480 = vbcast.lane.b32.xlu0 %v478, 256
          %v481 = vpop.permute.xlu0 %480
          %s483 = sor.u32 256, 8
          %484 = vbcast.lane.b32.xlu0 %v478, %s483
          %v485 = vpop.permute.xlu0 %484
          %s487 = sor.u32 256, 16
          %488 = vbcast.lane.b32.xlu0 %v478, %s487
          %v489 = vpop.permute.xlu0 %488
          %s491 = sor.u32 256, 24
          %492 = vbcast.lane.b32.xlu0 %v478, %s491
          %v493 = vpop.permute.xlu0 %492
          %v494 = vlaneseq
          %v495 = vshrl.u32 %v494, 7
          %v496 = vsub.s32 4, %v495
          %v497 = vrot.slane %v416, %v496
          %499 = vbcast.lane.b32.xlu0 %v497, 256
          %v500 = vpop.permute.xlu0 %499
          %s502 = sor.u32 256, 8
          %503 = vbcast.lane.b32.xlu0 %v497, %s502
          %v504 = vpop.permute.xlu0 %503
          %s506 = sor.u32 256, 16
          %507 = vbcast.lane.b32.xlu0 %v497, %s506
          %v508 = vpop.permute.xlu0 %507
          %s510 = sor.u32 256, 24
          %511 = vbcast.lane.b32.xlu0 %v497, %s510
          %v512 = vpop.permute.xlu0 %511
          %v513 = vlaneseq
          %v514 = vshrl.u32 %v513, 7
          %v515 = vsub.s32 5, %v514
          %v516 = vrot.slane %v416, %v515
          %518 = vbcast.lane.b32.xlu0 %v516, 256
          %v519 = vpop.permute.xlu0 %518
          %s521 = sor.u32 256, 8
          %522 = vbcast.lane.b32.xlu0 %v516, %s521
          %v523 = vpop.permute.xlu0 %522
          %s525 = sor.u32 256, 16
          %526 = vbcast.lane.b32.xlu0 %v516, %s525
          %v527 = vpop.permute.xlu0 %526
          %s529 = sor.u32 256, 24
          %530 = vbcast.lane.b32.xlu0 %v516, %s529
          %v531 = vpop.permute.xlu0 %530
          %v532 = vlaneseq
          %v533 = vshrl.u32 %v532, 7
          %v534 = vsub.s32 6, %v533
          %v535 = vrot.slane %v416, %v534
          %537 = vbcast.lane.b32.xlu0 %v535, 256
          %v538 = vpop.permute.xlu0 %537
          %s540 = sor.u32 256, 8
          %541 = vbcast.lane.b32.xlu0 %v535, %s540
          %v542 = vpop.permute.xlu0 %541
          %s544 = sor.u32 256, 16
          %545 = vbcast.lane.b32.xlu0 %v535, %s544
          %v546 = vpop.permute.xlu0 %545
          %s548 = sor.u32 256, 24
          %549 = vbcast.lane.b32.xlu0 %v535, %s548
          %v550 = vpop.permute.xlu0 %549
          %v551 = vlaneseq
          %v552 = vshrl.u32 %v551, 7
          %v553 = vsub.s32 7, %v552
          %v554 = vrot.slane %v416, %v553
          %556 = vbcast.lane.b32.xlu0 %v554, 256
          %v557 = vpop.permute.xlu0 %556
          %s559 = sor.u32 256, 8
          %560 = vbcast.lane.b32.xlu0 %v554, %s559
          %v561 = vpop.permute.xlu0 %560
          %s563 = sor.u32 256, 16
          %564 = vbcast.lane.b32.xlu0 %v554, %s563
          %v565 = vpop.permute.xlu0 %564
          %s567 = sor.u32 256, 24
          %568 = vbcast.lane.b32.xlu0 %v554, %s567
          %v569 = vpop.permute.xlu0 %568
          %v571 = vcombine.high %v417, %v417
          %v573 = vunpack.c.l.s4 1966171168
          %v574 = vunpack.c.0.s8 %v573
          %v575 = vlaneseq
          %v576 = vshrl.u32 %v575, 7
          %v577 = vsub.s32 %v574, %v576
          %v578 = vrot.slane %v417, %v577
          %v580 = vunpack.c.l.s4 1966171168
          %v581 = vunpack.c.0.s8 %v580
          %v582 = vlaneseq
          %v583 = vshrl.u32 %v582, 7
          %v584 = vsub.s32 %v581, %v583
          %v585 = vrot.slane %v571, %v584
          %v586 = vcombine.high %v578, %v578
          %v587 = vcombine.high %v585, %v585
          %v589 = vunpack.c.l.s4 1966171168
          %v590 = vunpack.c.0.s8 %v589
          %v591 = vlaneseq
          %v592 = vshrl.u32 %v591, 7
          %v593 = vsub.s32 %v590, %v592
          %v594 = vrot.slane %v578, %v593
          %v596 = vunpack.c.l.s4 1966171168
          %v597 = vunpack.c.0.s8 %v596
          %v598 = vlaneseq
          %v599 = vshrl.u32 %v598, 7
          %v600 = vsub.s32 %v597, %v599
          %v601 = vrot.slane %v585, %v600
          %v603 = vunpack.c.l.s4 1966171168
          %v604 = vunpack.c.0.s8 %v603
          %v605 = vlaneseq
          %v606 = vshrl.u32 %v605, 7
          %v607 = vsub.s32 %v604, %v606
          %v608 = vrot.slane %v586, %v607
          %v610 = vunpack.c.l.s4 1966171168
          %v611 = vunpack.c.0.s8 %v610
          %v612 = vlaneseq
          %v613 = vshrl.u32 %v612, 7
          %v614 = vsub.s32 %v611, %v613
          %v615 = vrot.slane %v587, %v614
          %v616 = vcombine.high %v594, %v594
          %v617 = vcombine.high %v601, %v601
          %v618 = vcombine.high %v608, %v608
          %v619 = vcombine.high %v615, %v615
          %v620 = vlaneseq
          %v621 = vshrl.u32 %v620, 7
          %v622 = vsub.s32 0, %v621
          %v623 = vrot.slane %v594, %v622
          %v624 = vlaneseq
          %v625 = vshrl.u32 %v624, 7
          %v626 = vsub.s32 0, %v625
          %v627 = vrot.slane %v608, %v626
          %v628 = vlaneseq
          %v629 = vshrl.u32 %v628, 7
          %v630 = vsub.s32 0, %v629
          %v631 = vrot.slane %v616, %v630
          %v632 = vlaneseq
          %v633 = vshrl.u32 %v632, 7
          %v634 = vsub.s32 0, %v633
          %v635 = vrot.slane %v618, %v634
          %v636 = vlaneseq
          %v637 = vshrl.u32 %v636, 7
          %v638 = vsub.s32 0, %v637
          %v639 = vrot.slane %v601, %v638
          %v640 = vlaneseq
          %v641 = vshrl.u32 %v640, 7
          %v642 = vsub.s32 0, %v641
          %v643 = vrot.slane %v615, %v642
          %v644 = vlaneseq
          %v645 = vshrl.u32 %v644, 7
          %v646 = vsub.s32 0, %v645
          %v647 = vrot.slane %v617, %v646
          %v648 = vlaneseq
          %v649 = vshrl.u32 %v648, 7
          %v650 = vsub.s32 0, %v649
          %v651 = vrot.slane %v619, %v650
          %v660 = vmul.f32 %v424, %v623
          %v661 = vmul.f32 %v428, %v623
          %v662 = vmul.f32 %v432, %v623
          %v663 = vmul.f32 %v436, %v623
          %v664 = vmul.f32 %v443, %v627
          %v665 = vmul.f32 %v447, %v627
          %v666 = vmul.f32 %v451, %v627
          %v667 = vmul.f32 %v455, %v627
          %v668 = vmul.f32 %v462, %v631
          %v669 = vmul.f32 %v466, %v631
          %v670 = vmul.f32 %v470, %v631
          %v671 = vmul.f32 %v474, %v631
          %v672 = vmul.f32 %v481, %v635
          %v673 = vmul.f32 %v485, %v635
          %v674 = vmul.f32 %v489, %v635
          %v675 = vmul.f32 %v493, %v635
          %v676 = vmul.f32 %v500, %v639
          %v677 = vmul.f32 %v504, %v639
          %v678 = vmul.f32 %v508, %v639
          %v679 = vmul.f32 %v512, %v639
          %v680 = vmul.f32 %v519, %v643
          %v681 = vmul.f32 %v523, %v643
          %v682 = vmul.f32 %v527, %v643
          %v683 = vmul.f32 %v531, %v643
          %v684 = vmul.f32 %v538, %v647
          %v685 = vmul.f32 %v542, %v647
          %v686 = vmul.f32 %v546, %v647
          %v687 = vmul.f32 %v550, %v647
          %v688 = vmul.f32 %v557, %v651
          %v689 = vmul.f32 %v561, %v651
          %v690 = vmul.f32 %v565, %v651
          %v691 = vmul.f32 %v569, %v651
          %v692 = vcombine.low %v660, %v668
          %v693 = vcombine.high %v660, %v668
          %v695 = vunpack.c.l.s4 1983009808
          %v696 = vunpack.c.0.s8 %v695
          %v697 = vlaneseq
          %v698 = vshrl.u32 %v697, 7
          %v699 = vsub.s32 %v696, %v698
          %v700 = vrot.slane %v692, %v699
          %v702 = vunpack.c.l.s4 1983009808
          %v703 = vunpack.c.0.s8 %v702
          %v704 = vlaneseq
          %v705 = vshrl.u32 %v704, 7
          %v706 = vsub.s32 %v703, %v705
          %v707 = vrot.slane %v693, %v706
          %v708 = vcombine.low %v664, %v672
          %v709 = vcombine.high %v664, %v672
          %v711 = vunpack.c.l.s4 1983009808
          %v712 = vunpack.c.0.s8 %v711
          %v713 = vlaneseq
          %v714 = vshrl.u32 %v713, 7
          %v715 = vsub.s32 %v712, %v714
          %v716 = vrot.slane %v708, %v715
          %v718 = vunpack.c.l.s4 1983009808
          %v719 = vunpack.c.0.s8 %v718
          %v720 = vlaneseq
          %v721 = vshrl.u32 %v720, 7
          %v722 = vsub.s32 %v719, %v721
          %v723 = vrot.slane %v709, %v722
          %v724 = vcombine.low %v676, %v684
          %v725 = vcombine.high %v676, %v684
          %v727 = vunpack.c.l.s4 1983009808
          %v728 = vunpack.c.0.s8 %v727
          %v729 = vlaneseq
          %v730 = vshrl.u32 %v729, 7
          %v731 = vsub.s32 %v728, %v730
          %v732 = vrot.slane %v724, %v731
          %v734 = vunpack.c.l.s4 1983009808
          %v735 = vunpack.c.0.s8 %v734
          %v736 = vlaneseq
          %v737 = vshrl.u32 %v736, 7
          %v738 = vsub.s32 %v735, %v737
          %v739 = vrot.slane %v725, %v738
          %v740 = vcombine.low %v680, %v688
          %v741 = vcombine.high %v680, %v688
          %v743 = vunpack.c.l.s4 1983009808
          %v744 = vunpack.c.0.s8 %v743
          %v745 = vlaneseq
          %v746 = vshrl.u32 %v745, 7
          %v747 = vsub.s32 %v744, %v746
          %v748 = vrot.slane %v740, %v747
          %v750 = vunpack.c.l.s4 1983009808
          %v751 = vunpack.c.0.s8 %v750
          %v752 = vlaneseq
          %v753 = vshrl.u32 %v752, 7
          %v754 = vsub.s32 %v751, %v753
          %v755 = vrot.slane %v741, %v754
          %v756 = vcombine.low %v700, %v716
          %v757 = vcombine.high %v700, %v716
          %v759 = vunpack.c.l.s4 1934713408
          %v760 = vunpack.c.0.s8 %v759
          %v761 = vlaneseq
          %v762 = vshrl.u32 %v761, 7
          %v763 = vsub.s32 %v760, %v762
          %v764 = vrot.slane %v756, %v763
          %v766 = vunpack.c.l.s4 1934713408
          %v767 = vunpack.c.0.s8 %v766
          %v768 = vlaneseq
          %v769 = vshrl.u32 %v768, 7
          %v770 = vsub.s32 %v767, %v769
          %v771 = vrot.slane %v757, %v770
          %v772 = vcombine.low %v707, %v723
          %v773 = vcombine.high %v707, %v723
          %v775 = vunpack.c.l.s4 1934713408
          %v776 = vunpack.c.0.s8 %v775
          %v777 = vlaneseq
          %v778 = vshrl.u32 %v777, 7
          %v779 = vsub.s32 %v776, %v778
          %v780 = vrot.slane %v772, %v779
          %v782 = vunpack.c.l.s4 1934713408
          %v783 = vunpack.c.0.s8 %v782
          %v784 = vlaneseq
          %v785 = vshrl.u32 %v784, 7
          %v786 = vsub.s32 %v783, %v785
          %v787 = vrot.slane %v773, %v786
          %v788 = vcombine.low %v732, %v748
          %v789 = vcombine.high %v732, %v748
          %v791 = vunpack.c.l.s4 1934713408
          %v792 = vunpack.c.0.s8 %v791
          %v793 = vlaneseq
          %v794 = vshrl.u32 %v793, 7
          %v795 = vsub.s32 %v792, %v794
          %v796 = vrot.slane %v788, %v795
          %v798 = vunpack.c.l.s4 1934713408
          %v799 = vunpack.c.0.s8 %v798
          %v800 = vlaneseq
          %v801 = vshrl.u32 %v800, 7
          %v802 = vsub.s32 %v799, %v801
          %v803 = vrot.slane %v789, %v802
          %v804 = vcombine.low %v739, %v755
          %v805 = vcombine.high %v739, %v755
          %v807 = vunpack.c.l.s4 1934713408
          %v808 = vunpack.c.0.s8 %v807
          %v809 = vlaneseq
          %v810 = vshrl.u32 %v809, 7
          %v811 = vsub.s32 %v808, %v810
          %v812 = vrot.slane %v804, %v811
          %v814 = vunpack.c.l.s4 1934713408
          %v815 = vunpack.c.0.s8 %v814
          %v816 = vlaneseq
          %v817 = vshrl.u32 %v816, 7
          %v818 = vsub.s32 %v815, %v817
          %v819 = vrot.slane %v805, %v818
          %v820 = vcombine.low %v764, %v796
          %v821 = vcombine.high %v764, %v796
          %v822 = vcombine.low %v771, %v803
          %v823 = vcombine.high %v771, %v803
          %v824 = vcombine.low %v780, %v812
          %v825 = vcombine.high %v780, %v812
          %v826 = vcombine.low %v787, %v819
          %v827 = vcombine.high %v787, %v819
          %v828 = vcombine.low %v661, %v669
          %v829 = vcombine.high %v661, %v669
          %v831 = vunpack.c.l.s4 1983009808
          %v832 = vunpack.c.0.s8 %v831
          %v833 = vlaneseq
          %v834 = vshrl.u32 %v833, 7
          %v835 = vsub.s32 %v832, %v834
          %v836 = vrot.slane %v828, %v835
          %v838 = vunpack.c.l.s4 1983009808
          %v839 = vunpack.c.0.s8 %v838
          %v840 = vlaneseq
          %v841 = vshrl.u32 %v840, 7
          %v842 = vsub.s32 %v839, %v841
          %v843 = vrot.slane %v829, %v842
          %v844 = vcombine.low %v665, %v673
          %v845 = vcombine.high %v665, %v673
          %v847 = vunpack.c.l.s4 1983009808
          %v848 = vunpack.c.0.s8 %v847
          %v849 = vlaneseq
          %v850 = vshrl.u32 %v849, 7
          %v851 = vsub.s32 %v848, %v850
          %v852 = vrot.slane %v844, %v851
          %v854 = vunpack.c.l.s4 1983009808
          %v855 = vunpack.c.0.s8 %v854
          %v856 = vlaneseq
          %v857 = vshrl.u32 %v856, 7
          %v858 = vsub.s32 %v855, %v857
          %v859 = vrot.slane %v845, %v858
          %v860 = vcombine.low %v677, %v685
          %v861 = vcombine.high %v677, %v685
          %v863 = vunpack.c.l.s4 1983009808
          %v864 = vunpack.c.0.s8 %v863
          %v865 = vlaneseq
          %v866 = vshrl.u32 %v865, 7
          %v867 = vsub.s32 %v864, %v866
          %v868 = vrot.slane %v860, %v867
          %v870 = vunpack.c.l.s4 1983009808
          %v871 = vunpack.c.0.s8 %v870
          %v872 = vlaneseq
          %v873 = vshrl.u32 %v872, 7
          %v874 = vsub.s32 %v871, %v873
          %v875 = vrot.slane %v861, %v874
          %v876 = vcombine.low %v681, %v689
          %v877 = vcombine.high %v681, %v689
          %v879 = vunpack.c.l.s4 1983009808
          %v880 = vunpack.c.0.s8 %v879
          %v881 = vlaneseq
          %v882 = vshrl.u32 %v881, 7
          %v883 = vsub.s32 %v880, %v882
          %v884 = vrot.slane %v876, %v883
          %v886 = vunpack.c.l.s4 1983009808
          %v887 = vunpack.c.0.s8 %v886
          %v888 = vlaneseq
          %v889 = vshrl.u32 %v888, 7
          %v890 = vsub.s32 %v887, %v889
          %v891 = vrot.slane %v877, %v890
          %v892 = vcombine.low %v836, %v852
          %v893 = vcombine.high %v836, %v852
          %v895 = vunpack.c.l.s4 1934713408
          %v896 = vunpack.c.0.s8 %v895
          %v897 = vlaneseq
          %v898 = vshrl.u32 %v897, 7
          %v899 = vsub.s32 %v896, %v898
          %v900 = vrot.slane %v892, %v899
          %v902 = vunpack.c.l.s4 1934713408
          %v903 = vunpack.c.0.s8 %v902
          %v904 = vlaneseq
          %v905 = vshrl.u32 %v904, 7
          %v906 = vsub.s32 %v903, %v905
          %v907 = vrot.slane %v893, %v906
          %v908 = vcombine.low %v843, %v859
          %v909 = vcombine.high %v843, %v859
          %v911 = vunpack.c.l.s4 1934713408
          %v912 = vunpack.c.0.s8 %v911
          %v913 = vlaneseq
          %v914 = vshrl.u32 %v913, 7
          %v915 = vsub.s32 %v912, %v914
          %v916 = vrot.slane %v908, %v915
          %v918 = vunpack.c.l.s4 1934713408
          %v919 = vunpack.c.0.s8 %v918
          %v920 = vlaneseq
          %v921 = vshrl.u32 %v920, 7
          %v922 = vsub.s32 %v919, %v921
          %v923 = vrot.slane %v909, %v922
          %v924 = vcombine.low %v868, %v884
          %v925 = vcombine.high %v868, %v884
          %v927 = vunpack.c.l.s4 1934713408
          %v928 = vunpack.c.0.s8 %v927
          %v929 = vlaneseq
          %v930 = vshrl.u32 %v929, 7
          %v931 = vsub.s32 %v928, %v930
          %v932 = vrot.slane %v924, %v931
          %v934 = vunpack.c.l.s4 1934713408
          %v935 = vunpack.c.0.s8 %v934
          %v936 = vlaneseq
          %v937 = vshrl.u32 %v936, 7
          %v938 = vsub.s32 %v935, %v937
          %v939 = vrot.slane %v925, %v938
          %v940 = vcombine.low %v875, %v891
          %v941 = vcombine.high %v875, %v891
          %v943 = vunpack.c.l.s4 1934713408
          %v944 = vunpack.c.0.s8 %v943
          %v945 = vlaneseq
          %v946 = vshrl.u32 %v945, 7
          %v947 = vsub.s32 %v944, %v946
          %v948 = vrot.slane %v940, %v947
          %v950 = vunpack.c.l.s4 1934713408
          %v951 = vunpack.c.0.s8 %v950
          %v952 = vlaneseq
          %v953 = vshrl.u32 %v952, 7
          %v954 = vsub.s32 %v951, %v953
          %v955 = vrot.slane %v941, %v954
          %v956 = vcombine.low %v900, %v932
          %v957 = vcombine.high %v900, %v932
          %v958 = vcombine.low %v907, %v939
          %v959 = vcombine.high %v907, %v939
          %v960 = vcombine.low %v916, %v948
          %v961 = vcombine.high %v916, %v948
          %v962 = vcombine.low %v923, %v955
          %v963 = vcombine.high %v923, %v955
          %v964 = vcombine.low %v662, %v670
          %v965 = vcombine.high %v662, %v670
          %v967 = vunpack.c.l.s4 1983009808
          %v968 = vunpack.c.0.s8 %v967
          %v969 = vlaneseq
          %v970 = vshrl.u32 %v969, 7
          %v971 = vsub.s32 %v968, %v970
          %v972 = vrot.slane %v964, %v971
          %v974 = vunpack.c.l.s4 1983009808
          %v975 = vunpack.c.0.s8 %v974
          %v976 = vlaneseq
          %v977 = vshrl.u32 %v976, 7
          %v978 = vsub.s32 %v975, %v977
          %v979 = vrot.slane %v965, %v978
          %v980 = vcombine.low %v666, %v674
          %v981 = vcombine.high %v666, %v674
          %v983 = vunpack.c.l.s4 1983009808
          %v984 = vunpack.c.0.s8 %v983
          %v985 = vlaneseq
          %v986 = vshrl.u32 %v985, 7
          %v987 = vsub.s32 %v984, %v986
          %v988 = vrot.slane %v980, %v987
          %v990 = vunpack.c.l.s4 1983009808
          %v991 = vunpack.c.0.s8 %v990
          %v992 = vlaneseq
          %v993 = vshrl.u32 %v992, 7
          %v994 = vsub.s32 %v991, %v993
          %v995 = vrot.slane %v981, %v994
          %v996 = vcombine.low %v678, %v686
          %v997 = vcombine.high %v678, %v686
          %v999 = vunpack.c.l.s4 1983009808
          %v1000 = vunpack.c.0.s8 %v999
          %v1001 = vlaneseq
          %v1002 = vshrl.u32 %v1001, 7
          %v1003 = vsub.s32 %v1000, %v1002
          %v1004 = vrot.slane %v996, %v1003
          %v1006 = vunpack.c.l.s4 1983009808
          %v1007 = vunpack.c.0.s8 %v1006
          %v1008 = vlaneseq
          %v1009 = vshrl.u32 %v1008, 7
          %v1010 = vsub.s32 %v1007, %v1009
          %v1011 = vrot.slane %v997, %v1010
          %v1012 = vcombine.low %v682, %v690
          %v1013 = vcombine.high %v682, %v690
          %v1015 = vunpack.c.l.s4 1983009808
          %v1016 = vunpack.c.0.s8 %v1015
          %v1017 = vlaneseq
          %v1018 = vshrl.u32 %v1017, 7
          %v1019 = vsub.s32 %v1016, %v1018
          %v1020 = vrot.slane %v1012, %v1019
          %v1022 = vunpack.c.l.s4 1983009808
          %v1023 = vunpack.c.0.s8 %v1022
          %v1024 = vlaneseq
          %v1025 = vshrl.u32 %v1024, 7
          %v1026 = vsub.s32 %v1023, %v1025
          %v1027 = vrot.slane %v1013, %v1026
          %v1028 = vcombine.low %v972, %v988
          %v1029 = vcombine.high %v972, %v988
          %v1031 = vunpack.c.l.s4 1934713408
          %v1032 = vunpack.c.0.s8 %v1031
          %v1033 = vlaneseq
          %v1034 = vshrl.u32 %v1033, 7
          %v1035 = vsub.s32 %v1032, %v1034
          %v1036 = vrot.slane %v1028, %v1035
          %v1038 = vunpack.c.l.s4 1934713408
          %v1039 = vunpack.c.0.s8 %v1038
          %v1040 = vlaneseq
          %v1041 = vshrl.u32 %v1040, 7
          %v1042 = vsub.s32 %v1039, %v1041
          %v1043 = vrot.slane %v1029, %v1042
          %v1044 = vcombine.low %v979, %v995
          %v1045 = vcombine.high %v979, %v995
          %v1047 = vunpack.c.l.s4 1934713408
          %v1048 = vunpack.c.0.s8 %v1047
          %v1049 = vlaneseq
          %v1050 = vshrl.u32 %v1049, 7
          %v1051 = vsub.s32 %v1048, %v1050
          %v1052 = vrot.slane %v1044, %v1051
          %v1054 = vunpack.c.l.s4 1934713408
          %v1055 = vunpack.c.0.s8 %v1054
          %v1056 = vlaneseq
          %v1057 = vshrl.u32 %v1056, 7
          %v1058 = vsub.s32 %v1055, %v1057
          %v1059 = vrot.slane %v1045, %v1058
          %v1060 = vcombine.low %v1004, %v1020
          %v1061 = vcombine.high %v1004, %v1020
          %v1063 = vunpack.c.l.s4 1934713408
          %v1064 = vunpack.c.0.s8 %v1063
          %v1065 = vlaneseq
          %v1066 = vshrl.u32 %v1065, 7
          %v1067 = vsub.s32 %v1064, %v1066
          %v1068 = vrot.slane %v1060, %v1067
          %v1070 = vunpack.c.l.s4 1934713408
          %v1071 = vunpack.c.0.s8 %v1070
          %v1072 = vlaneseq
          %v1073 = vshrl.u32 %v1072, 7
          %v1074 = vsub.s32 %v1071, %v1073
          %v1075 = vrot.slane %v1061, %v1074
          %v1076 = vcombine.low %v1011, %v1027
          %v1077 = vcombine.high %v1011, %v1027
          %v1079 = vunpack.c.l.s4 1934713408
          %v1080 = vunpack.c.0.s8 %v1079
          %v1081 = vlaneseq
          %v1082 = vshrl.u32 %v1081, 7
          %v1083 = vsub.s32 %v1080, %v1082
          %v1084 = vrot.slane %v1076, %v1083
          %v1086 = vunpack.c.l.s4 1934713408
          %v1087 = vunpack.c.0.s8 %v1086
          %v1088 = vlaneseq
          %v1089 = vshrl.u32 %v1088, 7
          %v1090 = vsub.s32 %v1087, %v1089
          %v1091 = vrot.slane %v1077, %v1090
          %v1092 = vcombine.low %v1036, %v1068
          %v1093 = vcombine.high %v1036, %v1068
          %v1094 = vcombine.low %v1043, %v1075
          %v1095 = vcombine.high %v1043, %v1075
          %v1096 = vcombine.low %v1052, %v1084
          %v1097 = vcombine.high %v1052, %v1084
          %v1098 = vcombine.low %v1059, %v1091
          %v1099 = vcombine.high %v1059, %v1091
          %v1100 = vcombine.low %v663, %v671
          %v1101 = vcombine.high %v663, %v671
          %v1103 = vunpack.c.l.s4 1983009808
          %v1104 = vunpack.c.0.s8 %v1103
          %v1105 = vlaneseq
          %v1106 = vshrl.u32 %v1105, 7
          %v1107 = vsub.s32 %v1104, %v1106
          %v1108 = vrot.slane %v1100, %v1107
          %v1110 = vunpack.c.l.s4 1983009808
          %v1111 = vunpack.c.0.s8 %v1110
          %v1112 = vlaneseq
          %v1113 = vshrl.u32 %v1112, 7
          %v1114 = vsub.s32 %v1111, %v1113
          %v1115 = vrot.slane %v1101, %v1114
          %v1116 = vcombine.low %v667, %v675
          %v1117 = vcombine.high %v667, %v675
          %v1119 = vunpack.c.l.s4 1983009808
          %v1120 = vunpack.c.0.s8 %v1119
          %v1121 = vlaneseq
          %v1122 = vshrl.u32 %v1121, 7
          %v1123 = vsub.s32 %v1120, %v1122
          %v1124 = vrot.slane %v1116, %v1123
          %v1126 = vunpack.c.l.s4 1983009808
          %v1127 = vunpack.c.0.s8 %v1126
          %v1128 = vlaneseq
          %v1129 = vshrl.u32 %v1128, 7
          %v1130 = vsub.s32 %v1127, %v1129
          %v1131 = vrot.slane %v1117, %v1130
          %v1132 = vcombine.low %v679, %v687
          %v1133 = vcombine.high %v679, %v687
          %v1135 = vunpack.c.l.s4 1983009808
          %v1136 = vunpack.c.0.s8 %v1135
          %v1137 = vlaneseq
          %v1138 = vshrl.u32 %v1137, 7
          %v1139 = vsub.s32 %v1136, %v1138
          %v1140 = vrot.slane %v1132, %v1139
          %v1142 = vunpack.c.l.s4 1983009808
          %v1143 = vunpack.c.0.s8 %v1142
          %v1144 = vlaneseq
          %v1145 = vshrl.u32 %v1144, 7
          %v1146 = vsub.s32 %v1143, %v1145
          %v1147 = vrot.slane %v1133, %v1146
          %v1148 = vcombine.low %v683, %v691
          %v1149 = vcombine.high %v683, %v691
          %v1151 = vunpack.c.l.s4 1983009808
          %v1152 = vunpack.c.0.s8 %v1151
          %v1153 = vlaneseq
          %v1154 = vshrl.u32 %v1153, 7
          %v1155 = vsub.s32 %v1152, %v1154
          %v1156 = vrot.slane %v1148, %v1155
          %v1158 = vunpack.c.l.s4 1983009808
          %v1159 = vunpack.c.0.s8 %v1158
          %v1160 = vlaneseq
          %v1161 = vshrl.u32 %v1160, 7
          %v1162 = vsub.s32 %v1159, %v1161
          %v1163 = vrot.slane %v1149, %v1162
          %v1164 = vcombine.low %v1108, %v1124
          %v1165 = vcombine.high %v1108, %v1124
          %v1167 = vunpack.c.l.s4 1934713408
          %v1168 = vunpack.c.0.s8 %v1167
          %v1169 = vlaneseq
          %v1170 = vshrl.u32 %v1169, 7
          %v1171 = vsub.s32 %v1168, %v1170
          %v1172 = vrot.slane %v1164, %v1171
          %v1174 = vunpack.c.l.s4 1934713408
          %v1175 = vunpack.c.0.s8 %v1174
          %v1176 = vlaneseq
          %v1177 = vshrl.u32 %v1176, 7
          %v1178 = vsub.s32 %v1175, %v1177
          %v1179 = vrot.slane %v1165, %v1178
          %v1180 = vcombine.low %v1115, %v1131
          %v1181 = vcombine.high %v1115, %v1131
          %v1183 = vunpack.c.l.s4 1934713408
          %v1184 = vunpack.c.0.s8 %v1183
          %v1185 = vlaneseq
          %v1186 = vshrl.u32 %v1185, 7
          %v1187 = vsub.s32 %v1184, %v1186
          %v1188 = vrot.slane %v1180, %v1187
          %v1190 = vunpack.c.l.s4 1934713408
          %v1191 = vunpack.c.0.s8 %v1190
          %v1192 = vlaneseq
          %v1193 = vshrl.u32 %v1192, 7
          %v1194 = vsub.s32 %v1191, %v1193
          %v1195 = vrot.slane %v1181, %v1194
          %v1196 = vcombine.low %v1140, %v1156
          %v1197 = vcombine.high %v1140, %v1156
          %v1199 = vunpack.c.l.s4 1934713408
          %v1200 = vunpack.c.0.s8 %v1199
          %v1201 = vlaneseq
          %v1202 = vshrl.u32 %v1201, 7
          %v1203 = vsub.s32 %v1200, %v1202
          %v1204 = vrot.slane %v1196, %v1203
          %v1206 = vunpack.c.l.s4 1934713408
          %v1207 = vunpack.c.0.s8 %v1206
          %v1208 = vlaneseq
          %v1209 = vshrl.u32 %v1208, 7
          %v1210 = vsub.s32 %v1207, %v1209
          %v1211 = vrot.slane %v1197, %v1210
          %v1212 = vcombine.low %v1147, %v1163
          %v1213 = vcombine.high %v1147, %v1163
          %v1215 = vunpack.c.l.s4 1934713408
          %v1216 = vunpack.c.0.s8 %v1215
          %v1217 = vlaneseq
          %v1218 = vshrl.u32 %v1217, 7
          %v1219 = vsub.s32 %v1216, %v1218
          %v1220 = vrot.slane %v1212, %v1219
          %v1222 = vunpack.c.l.s4 1934713408
          %v1223 = vunpack.c.0.s8 %v1222
          %v1224 = vlaneseq
          %v1225 = vshrl.u32 %v1224, 7
          %v1226 = vsub.s32 %v1223, %v1225
          %v1227 = vrot.slane %v1213, %v1226
          %v1228 = vcombine.low %v1172, %v1204
          %v1229 = vcombine.high %v1172, %v1204
          %v1230 = vcombine.low %v1179, %v1211
          %v1231 = vcombine.high %v1179, %v1211
          %v1232 = vcombine.low %v1188, %v1220
          %v1233 = vcombine.high %v1188, %v1220
          %v1234 = vcombine.low %v1195, %v1227
          %v1235 = vcombine.high %v1195, %v1227
          %1237 = vrot.lane.b32.xlu0 %v821, 32
          %v1238 = vpop.permute.xlu0 %1237
          %1241 = vrot.lane.b32.xlu0 %v822, 64
          %v1242 = vpop.permute.xlu0 %1241
          %1245 = vrot.lane.b32.xlu0 %v823, 96
          %v1246 = vpop.permute.xlu0 %1245
          %1249 = vrot.lane.b32.xlu0 %v825, 32
          %v1250 = vpop.permute.xlu0 %1249
          %1253 = vrot.lane.b32.xlu0 %v826, 64
          %v1254 = vpop.permute.xlu0 %1253
          %1257 = vrot.lane.b32.xlu0 %v827, 96
          %v1258 = vpop.permute.xlu0 %1257
          %1261 = vrot.lane.b32.xlu0 %v957, 32
          %v1262 = vpop.permute.xlu0 %1261
          %1265 = vrot.lane.b32.xlu0 %v958, 64
          %v1266 = vpop.permute.xlu0 %1265
          %1269 = vrot.lane.b32.xlu0 %v959, 96
          %v1270 = vpop.permute.xlu0 %1269
          %1273 = vrot.lane.b32.xlu0 %v961, 32
          %v1274 = vpop.permute.xlu0 %1273
          %1277 = vrot.lane.b32.xlu0 %v962, 64
          %v1278 = vpop.permute.xlu0 %1277
          %1281 = vrot.lane.b32.xlu0 %v963, 96
          %v1282 = vpop.permute.xlu0 %1281
          %1285 = vrot.lane.b32.xlu0 %v1093, 32
          %v1286 = vpop.permute.xlu0 %1285
          %1289 = vrot.lane.b32.xlu0 %v1094, 64
          %v1290 = vpop.permute.xlu0 %1289
          %1293 = vrot.lane.b32.xlu0 %v1095, 96
          %v1294 = vpop.permute.xlu0 %1293
          %1297 = vrot.lane.b32.xlu0 %v1097, 32
          %v1298 = vpop.permute.xlu0 %1297
          %1301 = vrot.lane.b32.xlu0 %v1098, 64
          %v1302 = vpop.permute.xlu0 %1301
          %1305 = vrot.lane.b32.xlu0 %v1099, 96
          %v1306 = vpop.permute.xlu0 %1305
          %1309 = vrot.lane.b32.xlu0 %v1229, 32
          %v1310 = vpop.permute.xlu0 %1309
          %1313 = vrot.lane.b32.xlu0 %v1230, 64
          %v1314 = vpop.permute.xlu0 %1313
          %1317 = vrot.lane.b32.xlu0 %v1231, 96
          %v1318 = vpop.permute.xlu0 %1317
          %1321 = vrot.lane.b32.xlu0 %v1233, 32
          %v1322 = vpop.permute.xlu0 %1321
          %1325 = vrot.lane.b32.xlu0 %v1234, 64
          %v1326 = vpop.permute.xlu0 %1325
          %1329 = vrot.lane.b32.xlu0 %v1235, 96
          %v1330 = vpop.permute.xlu0 %1329
          %vm1332 = vcmask 261120
          %v1333 = vsel %vm1332, %v820, %v1238
          %vm1334 = vcmask 523264
          %v1335 = vsel %vm1334, %v1333, %v1242
          %vm1336 = vcmask 785408
          %v1337 = vsel %vm1336, %v1335, %v1246
          %v1338 = vsel %vm1332, %v824, %v1250
          %v1339 = vsel %vm1334, %v1338, %v1254
          %v1340 = vsel %vm1336, %v1339, %v1258
          %v1341 = vsel %vm1332, %v956, %v1262
          %v1342 = vsel %vm1334, %v1341, %v1266
          %v1343 = vsel %vm1336, %v1342, %v1270
          %v1344 = vsel %vm1332, %v960, %v1274
          %v1345 = vsel %vm1334, %v1344, %v1278
          %v1346 = vsel %vm1336, %v1345, %v1282
          %v1347 = vsel %vm1332, %v1092, %v1286
          %v1348 = vsel %vm1334, %v1347, %v1290
          %v1349 = vsel %vm1336, %v1348, %v1294
          %v1350 = vsel %vm1332, %v1096, %v1298
          %v1351 = vsel %vm1334, %v1350, %v1302
          %v1352 = vsel %vm1336, %v1351, %v1306
          %v1353 = vsel %vm1332, %v1228, %v1310
          %v1354 = vsel %vm1334, %v1353, %v1314
          %v1355 = vsel %vm1336, %v1354, %v1318
          %v1356 = vsel %vm1332, %v1232, %v1322
          %v1357 = vsel %vm1334, %v1356, %v1326
          %v1358 = vsel %vm1336, %v1357, %v1330
          %1359 = vst [vmem:[#allocation2] sm:$0xff] %v1337
          %1360 = vst [vmem:[#allocation2 + $0x8] sm:$0xff] %v1340
          %1361 = vst [vmem:[#allocation2 + $0x10] sm:$0xff] %v1343
          %1362 = vst [vmem:[#allocation2 + $0x18] sm:$0xff] %v1346
          %1363 = vst [vmem:[#allocation2 + $0x20] sm:$0xff] %v1349
          %1364 = vst [vmem:[#allocation2 + $0x28] sm:$0xff] %v1352
          %1365 = vst [vmem:[#allocation2 + $0x30] sm:$0xff] %v1355
          %1366 = vst [vmem:[#allocation2 + $0x38] sm:$0xff] %v1358
        $region68: #{tpu_custom_call.1} parent=43 // pred_fallthru
          _
        %v1367 = vld [vmem:[#allocation2] sm:$0xff]
        %v1368 = vld [vmem:[#allocation2 + $0x8] sm:$0xff]
        %v1369 = vld [vmem:[#allocation2 + $0x10] sm:$0xff]
        %v1370 = vld [vmem:[#allocation2 + $0x18] sm:$0xff]
        %v1371 = vld [vmem:[#allocation2 + $0x20] sm:$0xff]
        %v1372 = vld [vmem:[#allocation2 + $0x28] sm:$0xff]
        %v1373 = vld [vmem:[#allocation2 + $0x30] sm:$0xff]
        %v1374 = vld [vmem:[#allocation2 + $0x38] sm:$0xff]
        %v1375 = vld [vmem:[%s342] sm:$0xff]
        %v1376 = vld [vmem:[%s342 + $0x8] sm:$0xff]
        %v1377 = vld [vmem:[%s342 + $0x10] sm:$0xff]
        %v1378 = vld [vmem:[%s342 + $0x18] sm:$0xff]
        %v1379 = vld [vmem:[%s342 + $0x20] sm:$0xff]
        %v1380 = vld [vmem:[%s342 + $0x28] sm:$0xff]
        %v1381 = vld [vmem:[%s342 + $0x30] sm:$0xff]
        %v1382 = vld [vmem:[%s342 + $0x38] sm:$0xff]
        %v1383 = vld [vmem:[%s342 + $0x40] sm:$0xff]
        %v1384 = vld [vmem:[%s342 + $0x48] sm:$0xff]
        %v1385 = vld [vmem:[%s342 + $0x50] sm:$0xff]
        %v1386 = vld [vmem:[%s342 + $0x58] sm:$0xff]
        %v1387 = vld [vmem:[%s342 + $0x60] sm:$0xff]
        %v1388 = vld [vmem:[%s342 + $0x68] sm:$0xff]
        %v1389 = vld [vmem:[%s342 + $0x70] sm:$0xff]
        %v1390 = vld [vmem:[%s342 + $0x78] sm:$0xff]
        %v1391 = vld [vmem:[%s342 + $0x80] sm:$0xff]
        %v1392 = vld [vmem:[%s342 + $0x88] sm:$0xff]
        %v1393 = vld [vmem:[%s342 + $0x90] sm:$0xff]
        %v1394 = vld [vmem:[%s342 + $0x98] sm:$0xff]
        %v1395 = vld [vmem:[%s342 + $0xa0] sm:$0xff]
        %v1396 = vld [vmem:[%s342 + $0xa8] sm:$0xff]
        %v1397 = vld [vmem:[%s342 + $0xb0] sm:$0xff]
        %v1398 = vld [vmem:[%s342 + $0xb8] sm:$0xff]
        %v1399 = vld [vmem:[%s342 + $0xc0] sm:$0xff]
        %v1400 = vld [vmem:[%s342 + $0xc8] sm:$0xff]
        %v1401 = vld [vmem:[%s342 + $0xd0] sm:$0xff]
        %v1402 = vld [vmem:[%s342 + $0xd8] sm:$0xff]
        %v1403 = vld [vmem:[%s342 + $0xe0] sm:$0xff]
        %v1404 = vld [vmem:[%s342 + $0xe8] sm:$0xff]
        %v1405 = vld [vmem:[%s342 + $0xf0] sm:$0xff]
        %v1406 = vld [vmem:[%s342 + $0xf8] sm:$0xff]
        %v1407 = vld [vmem:[%s342 + $0x100] sm:$0xff]
        %v1408 = vld [vmem:[%s342 + $0x108] sm:$0xff]
        %v1409 = vld [vmem:[%s342 + $0x110] sm:$0xff]
        %v1410 = vld [vmem:[%s342 + $0x118] sm:$0xff]
        %v1411 = vld [vmem:[%s342 + $0x120] sm:$0xff]
        %v1412 = vld [vmem:[%s342 + $0x128] sm:$0xff]
        %v1413 = vld [vmem:[%s342 + $0x130] sm:$0xff]
        %v1414 = vld [vmem:[%s342 + $0x138] sm:$0xff]
        %v1415 = vld [vmem:[%s342 + $0x140] sm:$0xff]
        %v1416 = vld [vmem:[%s342 + $0x148] sm:$0xff]
        %v1417 = vld [vmem:[%s342 + $0x150] sm:$0xff]
        %v1418 = vld [vmem:[%s342 + $0x158] sm:$0xff]
        %v1419 = vld [vmem:[%s342 + $0x160] sm:$0xff]
        %v1420 = vld [vmem:[%s342 + $0x168] sm:$0xff]
        %v1421 = vld [vmem:[%s342 + $0x170] sm:$0xff]
        %v1422 = vld [vmem:[%s342 + $0x178] sm:$0xff]
        %v1423 = vld [vmem:[%s342 + $0x180] sm:$0xff]
        %v1424 = vld [vmem:[%s342 + $0x188] sm:$0xff]
        %v1425 = vld [vmem:[%s342 + $0x190] sm:$0xff]
        %v1426 = vld [vmem:[%s342 + $0x198] sm:$0xff]
        %v1427 = vld [vmem:[%s342 + $0x1a0] sm:$0xff]
        %v1428 = vld [vmem:[%s342 + $0x1a8] sm:$0xff]
        %v1429 = vld [vmem:[%s342 + $0x1b0] sm:$0xff]
        %v1430 = vld [vmem:[%s342 + $0x1b8] sm:$0xff]
        %v1431 = vld [vmem:[%s342 + $0x1c0] sm:$0xff]
        %v1432 = vld [vmem:[%s342 + $0x1c8] sm:$0xff]
        %v1433 = vld [vmem:[%s342 + $0x1d0] sm:$0xff]
        %v1434 = vld [vmem:[%s342 + $0x1d8] sm:$0xff]
        %v1435 = vld [vmem:[%s342 + $0x1e0] sm:$0xff]
        %v1436 = vld [vmem:[%s342 + $0x1e8] sm:$0xff]
        %v1437 = vld [vmem:[%s342 + $0x1f0] sm:$0xff]
        %v1438 = vld [vmem:[%s342 + $0x1f8] sm:$0xff]
        %v1439 = vld [vmem:[%s342 + $0x200] sm:$0xff]
        %v1440 = vld [vmem:[%s342 + $0x208] sm:$0xff]
        %v1441 = vld [vmem:[%s342 + $0x210] sm:$0xff]
        %v1442 = vld [vmem:[%s342 + $0x218] sm:$0xff]
        %v1443 = vld [vmem:[%s342 + $0x220] sm:$0xff]
        %v1444 = vld [vmem:[%s342 + $0x228] sm:$0xff]
        %v1445 = vld [vmem:[%s342 + $0x230] sm:$0xff]
        %v1446 = vld [vmem:[%s342 + $0x238] sm:$0xff]
        %v1447 = vld [vmem:[%s342 + $0x240] sm:$0xff]
        %v1448 = vld [vmem:[%s342 + $0x248] sm:$0xff]
        %v1449 = vld [vmem:[%s342 + $0x250] sm:$0xff]
        %v1450 = vld [vmem:[%s342 + $0x258] sm:$0xff]
        %v1451 = vld [vmem:[%s342 + $0x260] sm:$0xff]
        %v1452 = vld [vmem:[%s342 + $0x268] sm:$0xff]
        %v1453 = vld [vmem:[%s342 + $0x270] sm:$0xff]
        %v1454 = vld [vmem:[%s342 + $0x278] sm:$0xff]
        %v1455 = vld [vmem:[%s342 + $0x280] sm:$0xff]
        %v1456 = vld [vmem:[%s342 + $0x288] sm:$0xff]
        %v1457 = vld [vmem:[%s342 + $0x290] sm:$0xff]
        %v1458 = vld [vmem:[%s342 + $0x298] sm:$0xff]
        %v1459 = vld [vmem:[%s342 + $0x2a0] sm:$0xff]
        %v1460 = vld [vmem:[%s342 + $0x2a8] sm:$0xff]
        %v1461 = vld [vmem:[%s342 + $0x2b0] sm:$0xff]
        %v1462 = vld [vmem:[%s342 + $0x2b8] sm:$0xff]
        %v1463 = vld [vmem:[%s342 + $0x2c0] sm:$0xff]
        %v1464 = vld [vmem:[%s342 + $0x2c8] sm:$0xff]
        %v1465 = vld [vmem:[%s342 + $0x2d0] sm:$0xff]
        %v1466 = vld [vmem:[%s342 + $0x2d8] sm:$0xff]
        %v1467 = vld [vmem:[%s342 + $0x2e0] sm:$0xff]
        %v1468 = vld [vmem:[%s342 + $0x2e8] sm:$0xff]
        %v1469 = vld [vmem:[%s342 + $0x2f0] sm:$0xff]
        %v1470 = vld [vmem:[%s342 + $0x2f8] sm:$0xff]
        %v1471 = vld [vmem:[%s342 + $0x300] sm:$0xff]
        %v1472 = vld [vmem:[%s342 + $0x308] sm:$0xff]
        %v1473 = vld [vmem:[%s342 + $0x310] sm:$0xff]
        %v1474 = vld [vmem:[%s342 + $0x318] sm:$0xff]
        %v1475 = vld [vmem:[%s342 + $0x320] sm:$0xff]
        %v1476 = vld [vmem:[%s342 + $0x328] sm:$0xff]
        %v1477 = vld [vmem:[%s342 + $0x330] sm:$0xff]
        %v1478 = vld [vmem:[%s342 + $0x338] sm:$0xff]
        %v1479 = vld [vmem:[%s342 + $0x340] sm:$0xff]
        %v1480 = vld [vmem:[%s342 + $0x348] sm:$0xff]
        %v1481 = vld [vmem:[%s342 + $0x350] sm:$0xff]
        %v1482 = vld [vmem:[%s342 + $0x358] sm:$0xff]
        %v1483 = vld [vmem:[%s342 + $0x360] sm:$0xff]
        %v1484 = vld [vmem:[%s342 + $0x368] sm:$0xff]
        %v1485 = vld [vmem:[%s342 + $0x370] sm:$0xff]
        %v1486 = vld [vmem:[%s342 + $0x378] sm:$0xff]
        %v1487 = vld [vmem:[%s342 + $0x380] sm:$0xff]
        %v1488 = vld [vmem:[%s342 + $0x388] sm:$0xff]
        %v1489 = vld [vmem:[%s342 + $0x390] sm:$0xff]
        %v1490 = vld [vmem:[%s342 + $0x398] sm:$0xff]
        %v1491 = vld [vmem:[%s342 + $0x3a0] sm:$0xff]
        %v1492 = vld [vmem:[%s342 + $0x3a8] sm:$0xff]
        %v1493 = vld [vmem:[%s342 + $0x3b0] sm:$0xff]
        %v1494 = vld [vmem:[%s342 + $0x3b8] sm:$0xff]
        %v1495 = vld [vmem:[%s342 + $0x3c0] sm:$0xff]
        %v1496 = vld [vmem:[%s342 + $0x3c8] sm:$0xff]
        %v1497 = vld [vmem:[%s342 + $0x3d0] sm:$0xff]
        %v1498 = vld [vmem:[%s342 + $0x3d8] sm:$0xff]
        %v1499 = vld [vmem:[%s342 + $0x3e0] sm:$0xff]
        %v1500 = vld [vmem:[%s342 + $0x3e8] sm:$0xff]
        %v1501 = vld [vmem:[%s342 + $0x3f0] sm:$0xff]
        %v1502 = vld [vmem:[%s342 + $0x3f8] sm:$0xff]
        %v1503 = vld [vmem:[#allocation3] sm:$0xff]
        %v1504 = vld [vmem:[%s351] sm:$0xff]
        %v1505 = vld [vmem:[%s351 + $0x8] sm:$0xff]
        %v1506 = vld [vmem:[%s351 + $0x10] sm:$0xff]
        %v1507 = vld [vmem:[%s351 + $0x18] sm:$0xff]
        %v1508 = vld [vmem:[#allocation6] sm:$0xff]
        %v1509 = vld [vmem:[%s360] sm:$0xff]
        %v1510 = vld [vmem:[%s360 + $0x8] sm:$0xff]
        %v1511 = vld [vmem:[%s360 + $0x10] sm:$0xff]
        %v1512 = vld [vmem:[%s360 + $0x18] sm:$0xff]
        %vm1513 = vcmask 261120
        %v1515 = vsel %vm1513, %v1508, 0
        %1517 = vmatprep.subr.mxu0 0.0
        %1518 = vmatpush1.msra.mxu0 %v1509
        %1519 = vmatprep.subr.mxu0 0.0
        %1520 = vmatpush1.msra.mxu0 %v1510
        %1521 = vmatprep.subr.mxu0 0.0
        %1522 = vmatpush1.msra.mxu0 %v1511
        %1523 = vmatprep.subr.mxu0 0.0
        %1524 = vmatpush1.msra.mxu0 %v1512
        %1525 = vmatprep.subr.mxu0 0.0
        %1526 = vmatpush1.msra.mxu0 0.0
        %1527 = vmatprep.subr.mxu0 0.0
        %1528 = vmatpush1.msra.mxu0 0.0
        %1529 = vmatprep.subr.mxu0 0.0
        %1530 = vmatpush1.msra.mxu0 0.0
        %1531 = vmatprep.subr.mxu0 0.0
        %1532 = vmatpush1.msra.mxu0 0.0
        %1533 = vmatprep.subr.mxu0 0.0
        %1534 = vmatpush1.msra.mxu0 0.0
        %1535 = vmatprep.subr.mxu0 0.0
        %1536 = vmatpush1.msra.mxu0 0.0
        %1537 = vmatprep.subr.mxu0 0.0
        %1538 = vmatpush1.msra.mxu0 0.0
        %1539 = vmatprep.subr.mxu0 0.0
        %1540 = vmatpush1.msra.mxu0 0.0
        %1541 = vmatprep.subr.mxu0 0.0
        %1542 = vmatpush1.msra.mxu0 0.0
        %1543 = vmatprep.subr.mxu0 0.0
        %1544 = vmatpush1.msra.mxu0 0.0
        %1545 = vmatprep.subr.mxu0 0.0
        %1546 = vmatpush1.msra.mxu0 0.0
        %1547 = vmatprep.subr.mxu0 0.0
        %1548 = vmatpush1.msra.mxu0 0.0
        %1549 = vmatprep.subr.mxu0 0.0
        %1550 = vmatpush1.msra.mxu0 0.0
        %1551 = vmatprep.subr.mxu0 0.0
        %1552 = vmatpush1.msra.mxu0 0.0
        %1553 = vmatprep.subr.mxu0 0.0
        %1554 = vmatpush1.msra.mxu0 0.0
        %1555 = vmatprep.subr.mxu0 0.0
        %1556 = vmatpush1.msra.mxu0 0.0
        %1557 = vmatprep.subr.mxu0 0.0
        %1558 = vmatpush1.msra.mxu0 0.0
        %1559 = vmatprep.subr.mxu0 0.0
        %1560 = vmatpush1.msra.mxu0 0.0
        %1561 = vmatprep.subr.mxu0 0.0
        %1562 = vmatpush1.msra.mxu0 0.0
        %1563 = vmatprep.subr.mxu0 0.0
        %1564 = vmatpush1.msra.mxu0 0.0
        %1565 = vmatprep.subr.mxu0 0.0
        %1566 = vmatpush1.msra.mxu0 0.0
        %1567 = vmatprep.subr.mxu0 0.0
        %1568 = vmatpush1.msra.mxu0 0.0
        %1569 = vmatprep.subr.mxu0 0.0
        %1570 = vmatpush1.msra.mxu0 0.0
        %1571 = vmatprep.subr.mxu0 0.0
        %1572 = vmatpush1.msra.mxu0 0.0
        %1573 = vmatprep.subr.mxu0 0.0
        %1574 = vmatpush1.msra.mxu0 0.0
        %1575 = vmatprep.subr.mxu0 0.0
        %1576 = vmatpush1.msra.mxu0 0.0
        %1577 = vmatprep.subr.mxu0 0.0
        %1578 = vmatpush1.msra.mxu0 0.0
        %1579 = vmatprep.subr.mxu0 0.0
        %1580 = vmatpush1.msra.mxu0 0.0
        %1581 = vmatprep.mubr.f32.mxu0 0.0
        %1582 = vmatmul.mubr.f32.gmra.mrb[0].mxu0 %v1515
        %v1583 = vpop.f32.mrb[0].mxu0
        %v1584 = vadd.f32 0.0, %v1583
        %v1585 = vpop.f32.mrb[0].mxu0
        %1586 = vdwg.mxu0
        %v1588 = vsel %vm1513, %v1503, 0
        %1590 = vmatprep.subr.mxu0 0.0
        %1591 = vmatpush1.msra.mxu0 %v1504
        %1592 = vmatprep.subr.mxu0 0.0
        %1593 = vmatpush1.msra.mxu0 %v1505
        %1594 = vmatprep.subr.mxu0 0.0
        %1595 = vmatpush1.msra.mxu0 %v1506
        %1596 = vmatprep.subr.mxu0 0.0
        %1597 = vmatpush1.msra.mxu0 %v1507
        %1598 = vmatprep.subr.mxu0 0.0
        %1599 = vmatpush1.msra.mxu0 0.0
        %1600 = vmatprep.subr.mxu0 0.0
        %1601 = vmatpush1.msra.mxu0 0.0
        %1602 = vmatprep.subr.mxu0 0.0
        %1603 = vmatpush1.msra.mxu0 0.0
        %1604 = vmatprep.subr.mxu0 0.0
        %1605 = vmatpush1.msra.mxu0 0.0
        %1606 = vmatprep.subr.mxu0 0.0
        %1607 = vmatpush1.msra.mxu0 0.0
        %1608 = vmatprep.subr.mxu0 0.0
        %1609 = vmatpush1.msra.mxu0 0.0
        %1610 = vmatprep.subr.mxu0 0.0
        %1611 = vmatpush1.msra.mxu0 0.0
        %1612 = vmatprep.subr.mxu0 0.0
        %1613 = vmatpush1.msra.mxu0 0.0
        %1614 = vmatprep.subr.mxu0 0.0
        %1615 = vmatpush1.msra.mxu0 0.0
        %1616 = vmatprep.subr.mxu0 0.0
        %1617 = vmatpush1.msra.mxu0 0.0
        %1618 = vmatprep.subr.mxu0 0.0
        %1619 = vmatpush1.msra.mxu0 0.0
        %1620 = vmatprep.subr.mxu0 0.0
        %1621 = vmatpush1.msra.mxu0 0.0
        %1622 = vmatprep.subr.mxu0 0.0
        %1623 = vmatpush1.msra.mxu0 0.0
        %1624 = vmatprep.subr.mxu0 0.0
        %1625 = vmatpush1.msra.mxu0 0.0
        %1626 = vmatprep.subr.mxu0 0.0
        %1627 = vmatpush1.msra.mxu0 0.0
        %1628 = vmatprep.subr.mxu0 0.0
        %1629 = vmatpush1.msra.mxu0 0.0
        %1630 = vmatprep.subr.mxu0 0.0
        %1631 = vmatpush1.msra.mxu0 0.0
        %1632 = vmatprep.subr.mxu0 0.0
        %1633 = vmatpush1.msra.mxu0 0.0
        %1634 = vmatprep.subr.mxu0 0.0
        %1635 = vmatpush1.msra.mxu0 0.0
        %1636 = vmatprep.subr.mxu0 0.0
        %1637 = vmatpush1.msra.mxu0 0.0
        %1638 = vmatprep.subr.mxu0 0.0
        %1639 = vmatpush1.msra.mxu0 0.0
        %1640 = vmatprep.subr.mxu0 0.0
        %1641 = vmatpush1.msra.mxu0 0.0
        %1642 = vmatprep.subr.mxu0 0.0
        %1643 = vmatpush1.msra.mxu0 0.0
        %1644 = vmatprep.subr.mxu0 0.0
        %1645 = vmatpush1.msra.mxu0 0.0
        %1646 = vmatprep.subr.mxu0 0.0
        %1647 = vmatpush1.msra.mxu0 0.0
        %1648 = vmatprep.subr.mxu0 0.0
        %1649 = vmatpush1.msra.mxu0 0.0
        %1650 = vmatprep.subr.mxu0 0.0
        %1651 = vmatpush1.msra.mxu0 0.0
        %1652 = vmatprep.subr.mxu0 0.0
        %1653 = vmatpush1.msra.mxu0 0.0
        %1654 = vmatprep.mubr.f32.mxu0 0.0
        %1655 = vmatmul.mubr.f32.gmra.mrb[0].mxu0 %v1588
        %v1656 = vpop.f32.mrb[0].mxu0
        %v1657 = vadd.f32 %v1584, %v1656
        %v1658 = vpop.f32.mrb[0].mxu0
        %1659 = vdwg.mxu0
        %1660 = vmatprep.subr.mxu0 0.0
        %1661 = vmatpush1.msra.mxu0 %v1375
        %1662 = vmatprep.subr.mxu0 0.0
        %1663 = vmatpush1.msra.mxu0 %v1376
        %1664 = vmatprep.subr.mxu0 0.0
        %1665 = vmatpush1.msra.mxu0 %v1377
        %1666 = vmatprep.subr.mxu0 0.0
        %1667 = vmatpush1.msra.mxu0 %v1378
        %1668 = vmatprep.subr.mxu0 0.0
        %1669 = vmatpush1.msra.mxu0 %v1379
        %1670 = vmatprep.subr.mxu0 0.0
        %1671 = vmatpush1.msra.mxu0 %v1380
        %1672 = vmatprep.subr.mxu0 0.0
        %1673 = vmatpush1.msra.mxu0 %v1381
        %1674 = vmatprep.subr.mxu0 0.0
        %1675 = vmatpush1.msra.mxu0 %v1382
        %1676 = vmatprep.subr.mxu0 0.0
        %1677 = vmatpush1.msra.mxu0 %v1383
        %1678 = vmatprep.subr.mxu0 0.0
        %1679 = vmatpush1.msra.mxu0 %v1384
        %1680 = vmatprep.subr.mxu0 0.0
        %1681 = vmatpush1.msra.mxu0 %v1385
        %1682 = vmatprep.subr.mxu0 0.0
        %1683 = vmatpush1.msra.mxu0 %v1386
        %1684 = vmatprep.subr.mxu0 0.0
        %1685 = vmatpush1.msra.mxu0 %v1387
        %1686 = vmatprep.subr.mxu0 0.0
        %1687 = vmatpush1.msra.mxu0 %v1388
        %1688 = vmatprep.subr.mxu0 0.0
        %1689 = vmatpush1.msra.mxu0 %v1389
        %1690 = vmatprep.subr.mxu0 0.0
        %1691 = vmatpush1.msra.mxu0 %v1390
        %1692 = vmatprep.subr.mxu0 0.0
        %1693 = vmatpush1.msra.mxu0 %v1391
        %1694 = vmatprep.subr.mxu0 0.0
        %1695 = vmatpush1.msra.mxu0 %v1392
        %1696 = vmatprep.subr.mxu0 0.0
        %1697 = vmatpush1.msra.mxu0 %v1393
        %1698 = vmatprep.subr.mxu0 0.0
        %1699 = vmatpush1.msra.mxu0 %v1394
        %1700 = vmatprep.subr.mxu0 0.0
        %1701 = vmatpush1.msra.mxu0 %v1395
        %1702 = vmatprep.subr.mxu0 0.0
        %1703 = vmatpush1.msra.mxu0 %v1396
        %1704 = vmatprep.subr.mxu0 0.0
        %1705 = vmatpush1.msra.mxu0 %v1397
        %1706 = vmatprep.subr.mxu0 0.0
        %1707 = vmatpush1.msra.mxu0 %v1398
        %1708 = vmatprep.subr.mxu0 0.0
        %1709 = vmatpush1.msra.mxu0 %v1399
        %1710 = vmatprep.subr.mxu0 0.0
        %1711 = vmatpush1.msra.mxu0 %v1400
        %1712 = vmatprep.subr.mxu0 0.0
        %1713 = vmatpush1.msra.mxu0 %v1401
        %1714 = vmatprep.subr.mxu0 0.0
        %1715 = vmatpush1.msra.mxu0 %v1402
        %1716 = vmatprep.subr.mxu0 0.0
        %1717 = vmatpush1.msra.mxu0 %v1403
        %1718 = vmatprep.subr.mxu0 0.0
        %1719 = vmatpush1.msra.mxu0 %v1404
        %1720 = vmatprep.subr.mxu0 0.0
        %1721 = vmatpush1.msra.mxu0 %v1405
        %1722 = vmatprep.subr.mxu0 0.0
        %1723 = vmatpush1.msra.mxu0 %v1406
        %1724 = vmatprep.mubr.f32.mxu0 %v1368
        %1725 = vmatmul.mubr.f32.gmra.mrb[0].mxu0 %v1367
        %v1726 = vpop.f32.mrb[0].mxu0
        %v1727 = vadd.f32 %v1657, %v1726
        %v1728 = vpop.f32.mrb[0].mxu0
        %1729 = vdwg.mxu0
        %1730 = vmatprep.subr.mxu0 0.0
        %1731 = vmatpush1.msra.mxu0 %v1407
        %1732 = vmatprep.subr.mxu0 0.0
        %1733 = vmatpush1.msra.mxu0 %v1408
        %1734 = vmatprep.subr.mxu0 0.0
        %1735 = vmatpush1.msra.mxu0 %v1409
        %1736 = vmatprep.subr.mxu0 0.0
        %1737 = vmatpush1.msra.mxu0 %v1410
        %1738 = vmatprep.subr.mxu0 0.0
        %1739 = vmatpush1.msra.mxu0 %v1411
        %1740 = vmatprep.subr.mxu0 0.0
        %1741 = vmatpush1.msra.mxu0 %v1412
        %1742 = vmatprep.subr.mxu0 0.0
        %1743 = vmatpush1.msra.mxu0 %v1413
        %1744 = vmatprep.subr.mxu0 0.0
        %1745 = vmatpush1.msra.mxu0 %v1414
        %1746 = vmatprep.subr.mxu0 0.0
        %1747 = vmatpush1.msra.mxu0 %v1415
        %1748 = vmatprep.subr.mxu0 0.0
        %1749 = vmatpush1.msra.mxu0 %v1416
        %1750 = vmatprep.subr.mxu0 0.0
        %1751 = vmatpush1.msra.mxu0 %v1417
        %1752 = vmatprep.subr.mxu0 0.0
        %1753 = vmatpush1.msra.mxu0 %v1418
        %1754 = vmatprep.subr.mxu0 0.0
        %1755 = vmatpush1.msra.mxu0 %v1419
        %1756 = vmatprep.subr.mxu0 0.0
        %1757 = vmatpush1.msra.mxu0 %v1420
        %1758 = vmatprep.subr.mxu0 0.0
        %1759 = vmatpush1.msra.mxu0 %v1421
        %1760 = vmatprep.subr.mxu0 0.0
        %1761 = vmatpush1.msra.mxu0 %v1422
        %1762 = vmatprep.subr.mxu0 0.0
        %1763 = vmatpush1.msra.mxu0 %v1423
        %1764 = vmatprep.subr.mxu0 0.0
        %1765 = vmatpush1.msra.mxu0 %v1424
        %1766 = vmatprep.subr.mxu0 0.0
        %1767 = vmatpush1.msra.mxu0 %v1425
        %1768 = vmatprep.subr.mxu0 0.0
        %1769 = vmatpush1.msra.mxu0 %v1426
        %1770 = vmatprep.subr.mxu0 0.0
        %1771 = vmatpush1.msra.mxu0 %v1427
        %1772 = vmatprep.subr.mxu0 0.0
        %1773 = vmatpush1.msra.mxu0 %v1428
        %1774 = vmatprep.subr.mxu0 0.0
        %1775 = vmatpush1.msra.mxu0 %v1429
        %1776 = vmatprep.subr.mxu0 0.0
        %1777 = vmatpush1.msra.mxu0 %v1430
        %1778 = vmatprep.subr.mxu0 0.0
        %1779 = vmatpush1.msra.mxu0 %v1431
        %1780 = vmatprep.subr.mxu0 0.0
        %1781 = vmatpush1.msra.mxu0 %v1432
        %1782 = vmatprep.subr.mxu0 0.0
        %1783 = vmatpush1.msra.mxu0 %v1433
        %1784 = vmatprep.subr.mxu0 0.0
        %1785 = vmatpush1.msra.mxu0 %v1434
        %1786 = vmatprep.subr.mxu0 0.0
        %1787 = vmatpush1.msra.mxu0 %v1435
        %1788 = vmatprep.subr.mxu0 0.0
        %1789 = vmatpush1.msra.mxu0 %v1436
        %1790 = vmatprep.subr.mxu0 0.0
        %1791 = vmatpush1.msra.mxu0 %v1437
        %1792 = vmatprep.subr.mxu0 0.0
        %1793 = vmatpush1.msra.mxu0 %v1438
        %1794 = vmatprep.mubr.f32.mxu0 %v1370
        %1795 = vmatmul.mubr.f32.gmra.mrb[0].mxu0 %v1369
        %v1796 = vpop.f32.mrb[0].mxu0
        %v1797 = vadd.f32 %v1727, %v1796
        %v1798 = vpop.f32.mrb[0].mxu0
        %1799 = vdwg.mxu0
        %1800 = vmatprep.subr.mxu0 0.0
        %1801 = vmatpush1.msra.mxu0 %v1439
        %1802 = vmatprep.subr.mxu0 0.0
        %1803 = vmatpush1.msra.mxu0 %v1440
        %1804 = vmatprep.subr.mxu0 0.0
        %1805 = vmatpush1.msra.mxu0 %v1441
        %1806 = vmatprep.subr.mxu0 0.0
        %1807 = vmatpush1.msra.mxu0 %v1442
        %1808 = vmatprep.subr.mxu0 0.0
        %1809 = vmatpush1.msra.mxu0 %v1443
        %1810 = vmatprep.subr.mxu0 0.0
        %1811 = vmatpush1.msra.mxu0 %v1444
        %1812 = vmatprep.subr.mxu0 0.0
        %1813 = vmatpush1.msra.mxu0 %v1445
        %1814 = vmatprep.subr.mxu0 0.0
        %1815 = vmatpush1.msra.mxu0 %v1446
        %1816 = vmatprep.subr.mxu0 0.0
        %1817 = vmatpush1.msra.mxu0 %v1447
        %1818 = vmatprep.subr.mxu0 0.0
        %1819 = vmatpush1.msra.mxu0 %v1448
        %1820 = vmatprep.subr.mxu0 0.0
        %1821 = vmatpush1.msra.mxu0 %v1449
        %1822 = vmatprep.subr.mxu0 0.0
        %1823 = vmatpush1.msra.mxu0 %v1450
        %1824 = vmatprep.subr.mxu0 0.0
        %1825 = vmatpush1.msra.mxu0 %v1451
        %1826 = vmatprep.subr.mxu0 0.0
        %1827 = vmatpush1.msra.mxu0 %v1452
        %1828 = vmatprep.subr.mxu0 0.0
        %1829 = vmatpush1.msra.mxu0 %v1453
        %1830 = vmatprep.subr.mxu0 0.0
        %1831 = vmatpush1.msra.mxu0 %v1454
        %1832 = vmatprep.subr.mxu0 0.0
        %1833 = vmatpush1.msra.mxu0 %v1455
        %1834 = vmatprep.subr.mxu0 0.0
        %1835 = vmatpush1.msra.mxu0 %v1456
        %1836 = vmatprep.subr.mxu0 0.0
        %1837 = vmatpush1.msra.mxu0 %v1457
        %1838 = vmatprep.subr.mxu0 0.0
        %1839 = vmatpush1.msra.mxu0 %v1458
        %1840 = vmatprep.subr.mxu0 0.0
        %1841 = vmatpush1.msra.mxu0 %v1459
        %1842 = vmatprep.subr.mxu0 0.0
        %1843 = vmatpush1.msra.mxu0 %v1460
        %1844 = vmatprep.subr.mxu0 0.0
        %1845 = vmatpush1.msra.mxu0 %v1461
        %1846 = vmatprep.subr.mxu0 0.0
        %1847 = vmatpush1.msra.mxu0 %v1462
        %1848 = vmatprep.subr.mxu0 0.0
        %1849 = vmatpush1.msra.mxu0 %v1463
        %1850 = vmatprep.subr.mxu0 0.0
        %1851 = vmatpush1.msra.mxu0 %v1464
        %1852 = vmatprep.subr.mxu0 0.0
        %1853 = vmatpush1.msra.mxu0 %v1465
        %1854 = vmatprep.subr.mxu0 0.0
        %1855 = vmatpush1.msra.mxu0 %v1466
        %1856 = vmatprep.subr.mxu0 0.0
        %1857 = vmatpush1.msra.mxu0 %v1467
        %1858 = vmatprep.subr.mxu0 0.0
        %1859 = vmatpush1.msra.mxu0 %v1468
        %1860 = vmatprep.subr.mxu0 0.0
        %1861 = vmatpush1.msra.mxu0 %v1469
        %1862 = vmatprep.subr.mxu0 0.0
        %1863 = vmatpush1.msra.mxu0 %v1470
        %1864 = vmatprep.mubr.f32.mxu0 %v1372
        %1865 = vmatmul.mubr.f32.gmra.mrb[0].mxu0 %v1371
        %v1866 = vpop.f32.mrb[0].mxu0
        %v1867 = vadd.f32 %v1797, %v1866
        %v1868 = vpop.f32.mrb[0].mxu0
        %1869 = vdwg.mxu0
        %1870 = vmatprep.subr.mxu0 0.0
        %1871 = vmatpush1.msra.mxu0 %v1471
        %1872 = vmatprep.subr.mxu0 0.0
        %1873 = vmatpush1.msra.mxu0 %v1472
        %1874 = vmatprep.subr.mxu0 0.0
        %1875 = vmatpush1.msra.mxu0 %v1473
        %1876 = vmatprep.subr.mxu0 0.0
        %1877 = vmatpush1.msra.mxu0 %v1474
        %1878 = vmatprep.subr.mxu0 0.0
        %1879 = vmatpush1.msra.mxu0 %v1475
        %1880 = vmatprep.subr.mxu0 0.0
        %1881 = vmatpush1.msra.mxu0 %v1476
        %1882 = vmatprep.subr.mxu0 0.0
        %1883 = vmatpush1.msra.mxu0 %v1477
        %1884 = vmatprep.subr.mxu0 0.0
        %1885 = vmatpush1.msra.mxu0 %v1478
        %1886 = vmatprep.subr.mxu0 0.0
        %1887 = vmatpush1.msra.mxu0 %v1479
        %1888 = vmatprep.subr.mxu0 0.0
        %1889 = vmatpush1.msra.mxu0 %v1480
        %1890 = vmatprep.subr.mxu0 0.0
        %1891 = vmatpush1.msra.mxu0 %v1481
        %1892 = vmatprep.subr.mxu0 0.0
        %1893 = vmatpush1.msra.mxu0 %v1482
        %1894 = vmatprep.subr.mxu0 0.0
        %1895 = vmatpush1.msra.mxu0 %v1483
        %1896 = vmatprep.subr.mxu0 0.0
        %1897 = vmatpush1.msra.mxu0 %v1484
        %1898 = vmatprep.subr.mxu0 0.0
        %1899 = vmatpush1.msra.mxu0 %v1485
        %1900 = vmatprep.subr.mxu0 0.0
        %1901 = vmatpush1.msra.mxu0 %v1486
        %1902 = vmatprep.subr.mxu0 0.0
        %1903 = vmatpush1.msra.mxu0 %v1487
        %1904 = vmatprep.subr.mxu0 0.0
        %1905 = vmatpush1.msra.mxu0 %v1488
        %1906 = vmatprep.subr.mxu0 0.0
        %1907 = vmatpush1.msra.mxu0 %v1489
        %1908 = vmatprep.subr.mxu0 0.0
        %1909 = vmatpush1.msra.mxu0 %v1490
        %1910 = vmatprep.subr.mxu0 0.0
        %1911 = vmatpush1.msra.mxu0 %v1491
        %1912 = vmatprep.subr.mxu0 0.0
        %1913 = vmatpush1.msra.mxu0 %v1492
        %1914 = vmatprep.subr.mxu0 0.0
        %1915 = vmatpush1.msra.mxu0 %v1493
        %1916 = vmatprep.subr.mxu0 0.0
        %1917 = vmatpush1.msra.mxu0 %v1494
        %1918 = vmatprep.subr.mxu0 0.0
        %1919 = vmatpush1.msra.mxu0 %v1495
        %1920 = vmatprep.subr.mxu0 0.0
        %1921 = vmatpush1.msra.mxu0 %v1496
        %1922 = vmatprep.subr.mxu0 0.0
        %1923 = vmatpush1.msra.mxu0 %v1497
        %1924 = vmatprep.subr.mxu0 0.0
        %1925 = vmatpush1.msra.mxu0 %v1498
        %1926 = vmatprep.subr.mxu0 0.0
        %1927 = vmatpush1.msra.mxu0 %v1499
        %1928 = vmatprep.subr.mxu0 0.0
        %1929 = vmatpush1.msra.mxu0 %v1500
        %1930 = vmatprep.subr.mxu0 0.0
        %1931 = vmatpush1.msra.mxu0 %v1501
        %1932 = vmatprep.subr.mxu0 0.0
        %1933 = vmatpush1.msra.mxu0 %v1502
        %1934 = vmatprep.mubr.f32.mxu0 %v1374
        %1935 = vmatmul.mubr.f32.gmra.mrb[0].mxu0 %v1373
        %v1936 = vpop.f32.mrb[0].mxu0
        %v1937 = vadd.f32 %v1867, %v1936
        %v1938 = vpop.f32.mrb[0].mxu0
        %1939 = vdwg.mxu0
        %v1940 = vld [vmem:[%s409] sm:$0x1]
        %v1942 = vlaneseq
        %v1943 = vshrl.u32 %v1942, 7
        %v1944 = vsub.s32 0, %v1943
        %v1945 = vrot.slane %v1940, %v1944
        %v1947 = vadd.f32 %v1937, %v1945
        %1948 = vst [vmem:[%s402] sm:$0xff] %v1947
        %s1949 = sand.u32 %s198, 1
        %s1950 = scalar_lea.sflag [#allocation5], %s1949
        %s1951 = sand.u32 %s198, 1
        %s1952 = smul.addr %s1951, 8
        %s1953 = scalar_lea.vmem [#allocation11], %s1952
        // Predicated region
        $region69: #{tpu_custom_call.1} parent=43 // pred_check
          %p1954 = pneg %p208
        $region70: #{tpu_custom_call.1} parent=43 // pred_check_branch
          %1956 = sbr.rel (%p1954) target = $region72
        $region71: #{tpu_custom_call.1} parent=43 // pred_region
          %s1957 = sadd.s32 %s26, %s27
          %s1959 = ssub.s32 128, 128
          %1960 = vsyncadd %s1950, %s1959
          %s1961 = smul.addr %s1957, 128
          %s1962 = scalar_lea.hbm %s6, %s1961
          %s1964 = sshll.u32 %s1953, 4
          %s1965 = int_to_ptr.vmem [resolvable:$true] %s1964
          %1967 = dma.vmem_to_hbm [thread:$0]  %s1965, 128, %s1962, %s1950
        $region72: #{tpu_custom_call.1} parent=43 // pred_fallthru
          _
      $region44: #{tpu_custom_call.1} parent=5 // pred_fallthru
        _
      %p1968 = scmp.le.s32.totalorder 2, %s17
      // Predicated region
      $region73: #{tpu_custom_call.1} parent=5 // pred_check
        %p1969 = pneg %p1968
      $region74: #{tpu_custom_call.1} parent=5 // pred_check_branch
        %1971 = sbr.rel (%p1969) target = $region76
      $region75: #{tpu_custom_call.1} parent=5 // pred_region
        %s1972 = ssub.s32 %s17, 2
        // Predicated region
        $region77: #{tpu_custom_call.1} parent=75 // pred_check
          %p1973 = pneg %p214
        $region78: #{tpu_custom_call.1} parent=75 // pred_check_branch
          %1975 = sbr.rel (%p1973) target = $region80
        $region79: #{tpu_custom_call.1} parent=75 // pred_region
          %s1976 = sand.u32 %s199, 1
          %s1977 = scalar_lea.sflag [#allocation5], %s1976
          %s1978 = sand.u32 %s199, 1
          %s1979 = smul.addr %s1978, 8
          %s1980 = scalar_lea.vmem [#allocation11], %s1979
          %1981 = dma.done %s1977, 128
        $region80: #{tpu_custom_call.1} parent=75 // pred_fallthru
          _
      $region76: #{tpu_custom_call.1} parent=5 // pred_fallthru
        _
    $region6: #{tpu_custom_call.1} parent=1 // loop_footer
      %s21 = sadd.s32 1, %s17
    $region7: #{tpu_custom_call.1} parent=1 // loop_footer_branch
      %16 = sbr.rel target = $region3
    $region8: #{tpu_custom_call.1} parent=1 // loop_exit
      _
    %1982 = vsyncpa [#allocation4], 1
    %s1983 = scalar_lea.sflag [#allocation4], 1
    %1984 = vsyncpa %s1983, 1
    %1985 = vsyncpa [#allocation7], 1
    %1986 = vsyncpa [#allocation5], 1
    %s1987 = scalar_lea.sflag [#allocation5], 1
    %1988 = vsyncpa %s1987, 1

</llo_original>
